<compile_context>
chip_gen: v5e
topology: v5e:2x2
jax: 0.10.0
libtpu: 0.0.40
codegen_flags: <defaults>
</compile_context>

<pallas_src>
import functools
import math

import jax
import jax.numpy as jnp
import numpy as np
from jax import lax
from jax.experimental import pallas as pl
from jax.experimental.pallas import tpu as pltpu

# ----------------------------- config ---------------------------------------
B = 2            # batch
C = 64           # num_channels
H = W = 8        # spatial dims
HW = H * W
NORM_GROUPS = 8  # GroupNorm groups (C % NORM_GROUPS == 0)
NUM_HEADS = 2    # attention heads
DIM_COND = 32    # conditional embedding dim
N_TOK = 8        # number of conditioning tokens
RESCALE = False  # rescale_skip_connection
EPS = 1e-5

_TRANS_B = (((1,), (1,)), ((), ()))   # contract last dims: A @ B^T


# ----------------------------- kernel ---------------------------------------
def _adm_attn_block_kernel(
    x_ref, ce_ref, eye_ref, gamma_ref, beta_ref, gmat_ref, gmatT_ref,
    wqkv_ref, bqkv_ref, wc_ref, bc_ref, woT_ref, bo_ref,
    o_ref,
    *, num_heads: int, rescale: bool,
):
    f32 = jnp.float32

    xc = x_ref[0]            # [C, HW]  channel-major (native NCHW block)
    ce = ce_ref[0]           # [N, DC]  conditioning tokens
    eye = eye_ref[...]       # [HW, HW] identity (MXU transpose helper)
    gamma = gamma_ref[...]   # [1, C]
    beta = beta_ref[...]     # [1, C]
    gmat = gmat_ref[...]     # [C, G] group-indicator matrix
    gmatT = gmatT_ref[...]   # [G, C]

    c, hw = xc.shape
    g = gmat.shape[1]
    cg = c // g
    inv_n = 1.0 / float(hw * cg)

    # ---- channel-major -> sequence-major transpose on the MXU ----
    # x_seq[i, ch] = sum_j eye[i, j] * xc[ch, j] = xc[ch, i]
    x_seq = lax.dot_general(eye, xc, _TRANS_B, preferred_element_type=f32)   # [HW, C]

    # ---- Fp32GroupNorm (single-pass stats, stacked [2, C]) ----
    s1 = jnp.sum(x_seq, axis=0, keepdims=True)              # [1, C]  sum x
    s2 = jnp.sum(x_seq * x_seq, axis=0, keepdims=True)      # [1, C]  sum x^2
    s12 = jnp.concatenate([s1, s2], axis=0)                 # [2, C]
    sg = jnp.dot(s12, gmat, preferred_element_type=f32) * inv_n   # [2, G] E[x], E[x^2]
    sc = jnp.dot(sg, gmatT, preferred_element_type=f32)           # [2, C] back to channels
    mean_c = sc[0:1, :]
    var_c = sc[1:2, :] - mean_c * mean_c
    xn = (x_seq - mean_c) * lax.rsqrt(var_c + EPS) * gamma + beta  # [HW, C]

    # ---- fused q/k/v projection (one wide matmul) ----
    qkv = jnp.dot(xn, wqkv_ref[...], preferred_element_type=f32) + bqkv_ref[...]   # [HW, 3C]

    # ---- conditional projection (ADMCrossAttention.cond_proj) ----
    cond = jnp.dot(ce, wc_ref[...], preferred_element_type=f32) + bc_ref[...]      # [N, 2C]

    dq = c // num_heads
    scale = 1.0 / math.sqrt(dq)
    woT = woT_ref[...]                                       # [C, C]  (Wo^T)

    out_chw = None
    for h in range(num_heads):
        qh = qkv[:, h * dq:(h + 1) * dq] * scale             # [HW, dq]
        kh = qkv[:, c + h * dq: c + (h + 1) * dq]            # [HW, dq]
        vh = qkv[:, 2 * c + h * dq: 2 * c + (h + 1) * dq]    # [HW, dq]
        ck = cond[:, h * 2 * dq: h * 2 * dq + dq]            # [N, dq]
        cv = cond[:, h * 2 * dq + dq: (h + 1) * 2 * dq]      # [N, dq]

        # scores against [cond_k ; k] without materializing the concat
        s_c = lax.dot_general(qh, ck, _TRANS_B, preferred_element_type=f32)   # [HW, N]
        s_s = lax.dot_general(qh, kh, _TRANS_B, preferred_element_type=f32)   # [HW, HW]

        m = jnp.maximum(jnp.max(s_c, axis=-1, keepdims=True),
                        jnp.max(s_s, axis=-1, keepdims=True))
        p_c = jnp.exp(s_c - m)
        p_s = jnp.exp(s_s - m)
        denom = jnp.sum(p_c, axis=-1, keepdims=True) + jnp.sum(p_s, axis=-1, keepdims=True)
        inv = pl.reciprocal(denom, approx=True)
        o_h = (jnp.dot(p_c, cv, preferred_element_type=f32)
               + jnp.dot(p_s, vh, preferred_element_type=f32)) * inv          # [HW, dq]

        # per-head output projection, directly producing channel-major [C, HW]
        woT_h = woT[:, h * dq:(h + 1) * dq]                                   # [C, dq]
        part = lax.dot_general(woT_h, o_h, _TRANS_B, preferred_element_type=f32)  # [C, HW]
        out_chw = part if out_chw is None else out_chw + part

    res = xc + out_chw + bo_ref[...]       # bo: [C, 1] broadcasts over lanes
    if rescale:
        res = res * (1.0 / 1.414)
    o_ref[0] = res


# ----------------------------- wrapper ---------------------------------------
def adm_attention_block(x_nchw, cond_emb, params, *, num_heads=NUM_HEADS,
                        norm_groups=NORM_GROUPS, rescale=RESCALE):
    b, c, h, w = x_nchw.shape
    hw = h * w
    n_tok, dim_cond = cond_emb.shape[1], cond_emb.shape[2]

    # free (contiguous) reshape: NCHW -> [B, C, HW]; no transposes in the wrapper
    x_chw = x_nchw.reshape(b, c, hw)

    # group-indicator matrix: gmat[ch, grp] = 1 if ch belongs to grp
    cg = c // norm_groups
    gmat = (jnp.arange(c)[:, None] // cg
            == jnp.arange(norm_groups)[None, :]).astype(jnp.float32)
    gmatT = gmat.T
    eye_hw = jnp.eye(hw, dtype=jnp.float32)

    gamma2 = params["gamma"].reshape(1, c)
    beta2 = params["beta"].reshape(1, c)
    wqkv = jnp.concatenate([params["wq"], params["wk"], params["wv"]], axis=1)  # [C, 3C]
    bqkv = jnp.concatenate([params["bq"], params["bk"], params["bv"]]).reshape(1, 3 * c)
    bc2 = params["bc"].reshape(1, 2 * c)
    woT = params["wo"].T                                                        # [C, C]
    bo_col = params["bo"].reshape(c, 1)

    kernel = functools.partial(_adm_attn_block_kernel,
                               num_heads=num_heads, rescale=rescale)

    def bcast(shape):
        nd = len(shape)
        return pl.BlockSpec(shape, lambda i, _nd=nd: (0,) * _nd)

    out_chw = pl.pallas_call(
        kernel,
        out_shape=jax.ShapeDtypeStruct((b, c, hw), jnp.float32),
        grid_spec=pltpu.PrefetchScalarGridSpec(
            num_scalar_prefetch=0,
            grid=(b,),
            in_specs=[
                pl.BlockSpec((1, c, hw), lambda i: (i, 0, 0)),            # x (NCHW block)
                pl.BlockSpec((1, n_tok, dim_cond), lambda i: (i, 0, 0)),  # cond tokens
                bcast((hw, hw)),                                          # identity
                bcast((1, c)), bcast((1, c)),                             # gamma, beta
                bcast((c, norm_groups)), bcast((norm_groups, c)),         # gmat, gmat^T
                bcast((c, 3 * c)), bcast((1, 3 * c)),                     # Wqkv, bqkv
                bcast((dim_cond, 2 * c)), bcast((1, 2 * c)),              # Wc, bc
                bcast((c, c)), bcast((c, 1)),                             # Wo^T, bo
            ],
            out_specs=pl.BlockSpec((1, c, hw), lambda i: (i, 0, 0)),
        ),
        compiler_params=pltpu.CompilerParams(
            dimension_semantics=("parallel",)),
    )(x_chw, cond_emb, eye_hw, gamma2, beta2, gmat, gmatT,
      wqkv, bqkv, params["wc"], bc2, woT, bo_col)

    # free reshape back to NCHW
    return out_chw.reshape(b, c, h, w)


# jitted entry point for the test config (static module hyper-parameters)
adm_attention_block_jit = jax.jit(functools.partial(
    adm_attention_block, num_heads=NUM_HEADS, norm_groups=NORM_GROUPS,
    rescale=RESCALE))


# --------------------------- pure-JAX reference ------------------------------
def adm_attention_block_ref(x_nchw, cond_emb, params, *, num_heads=NUM_HEADS,
                            norm_groups=NORM_GROUPS, rescale=RESCALE):
    b, c, h, w = x_nchw.shape
    hw = h * w
    cg = c // norm_groups

    xg = x_nchw.reshape(b, norm_groups, cg, hw)
    mean = xg.mean(axis=(2, 3), keepdims=True)
    var = ((xg - mean) ** 2).mean(axis=(2, 3), keepdims=True)
    xn = (xg - mean) / jnp.sqrt(var + EPS)
    xn = xn.reshape(b, c, h, w) * params["gamma"][None, :, None, None] \
         + params["beta"][None, :, None, None]

    t = xn.reshape(b, c, hw).transpose(0, 2, 1)  # [B, HW, C]
    q = t @ params["wq"] + params["bq"]
    k = t @ params["wk"] + params["bk"]
    v = t @ params["wv"] + params["bv"]
    cproj = cond_emb @ params["wc"] + params["bc"]  # [B, N, 2C]

    dq = c // num_heads
    outs = []
    for hh in range(num_heads):
        qh = q[..., hh * dq:(hh + 1) * dq]
        kh = k[..., hh * dq:(hh + 1) * dq]
        vh = v[..., hh * dq:(hh + 1) * dq]
        ck = cproj[..., hh * 2 * dq: hh * 2 * dq + dq]
        cv = cproj[..., hh * 2 * dq + dq: (hh + 1) * 2 * dq]
        kc = jnp.concatenate([ck, kh], axis=1)
        vc = jnp.concatenate([cv, vh], axis=1)
        s = jnp.einsum("bqd,bkd->bqk", qh, kc) / math.sqrt(dq)
        p = jax.nn.softmax(s, axis=-1)
        outs.append(jnp.einsum("bqk,bkd->bqd", p, vc))
    a = jnp.concatenate(outs, axis=-1)
    o = a @ params["wo"] + params["bo"]
    o = o.transpose(0, 2, 1).reshape(b, c, h, w)
    res = x_nchw + o
    return res / 1.414 if rescale else res


# ------------------------------- main ----------------------------------------
if __name__ == "__main__":
    key = jax.random.PRNGKey(0)
    keys = jax.random.split(key, 14)

    x = jax.random.normal(keys[0], (B, C, H, W), dtype=jnp.float32)
    cond = jax.random.normal(keys[1], (B, N_TOK, DIM_COND), dtype=jnp.float32)

    s = 0.05
    params = {
        # Fp32GroupNorm affine
        "gamma": 1.0 + 0.1 * jax.random.normal(keys[2], (C,), jnp.float32),
        "beta": 0.1 * jax.random.normal(keys[3], (C,), jnp.float32),
        # MultiHeadAttention projections (weights stored as [in, out])
        "wq": s * jax.random.normal(keys[4], (C, C), jnp.float32),
        "bq": s * jax.random.normal(keys[5], (C,), jnp.float32),
        "wk": s * jax.random.normal(keys[6], (C, C), jnp.float32),
        "bk": s * jax.random.normal(keys[7], (C,), jnp.float32),
        "wv": s * jax.random.normal(keys[8], (C, C), jnp.float32),
        "bv": s * jax.random.normal(keys[9], (C,), jnp.float32),
        # ADMCrossAttention.cond_proj: Linear(dim_cond, 2*C)
        "wc": s * jax.random.normal(keys[10], (DIM_COND, 2 * C), jnp.float32),
        "bc": s * jax.random.normal(keys[11], (2 * C,), jnp.float32),
        # output projection
        "wo": s * jax.random.normal(keys[12], (C, C), jnp.float32),
        "bo": s * jax.random.normal(keys[13], (C,), jnp.float32),
    }

    out = adm_attention_block_jit(x, cond, params)
    out = jax.block_until_ready(out)

    ref = jax.block_until_ready(adm_attention_block_ref(x, cond, params))

    assert out.shape == (B, C, H, W), out.shape
    np.testing.assert_allclose(np.asarray(out), np.asarray(ref), atol=2e-2, rtol=2e-2)

    print("KERNEL_OK")
</pallas_src>

<mosaic_0001>
module attributes {stable_mosaic.version = 11 : i64} {
  func.func @_adm_attn_block_kernel(%arg0: i32, %arg1: memref<1x64x64xf32, #tpu.memory_space<vmem>>, %arg2: memref<1x8x32xf32, #tpu.memory_space<vmem>>, %arg3: memref<64x64xf32, #tpu.memory_space<vmem>>, %arg4: memref<1x64xf32, #tpu.memory_space<vmem>>, %arg5: memref<1x64xf32, #tpu.memory_space<vmem>>, %arg6: memref<64x8xf32, #tpu.memory_space<vmem>>, %arg7: memref<8x64xf32, #tpu.memory_space<vmem>>, %arg8: memref<64x192xf32, #tpu.memory_space<vmem>>, %arg9: memref<1x192xf32, #tpu.memory_space<vmem>>, %arg10: memref<32x128xf32, #tpu.memory_space<vmem>>, %arg11: memref<1x128xf32, #tpu.memory_space<vmem>>, %arg12: memref<64x64xf32, #tpu.memory_space<vmem>>, %arg13: memref<64x1xf32, #tpu.memory_space<vmem>>, %arg14: memref<1x64x64xf32, #tpu.memory_space<vmem>>) attributes {dimension_semantics = [#tpu.dimension_semantics<parallel>], iteration_bounds = array<i64: 2>, scalar_prefetch = 0 : i64, scratch_operands = 0 : i64, tpu.core_type = #tpu.core_type<tc>, window_params = [{transform_indices = @transform_0, window_bounds = array<i64: 1, 64, 64>}, {transform_indices = @transform_1, window_bounds = array<i64: 1, 8, 32>}, {pipeline_mode = #tpu.pipeline_mode<synchronous>, transform_indices = @transform_2, window_bounds = array<i64: 64, 64>}, {pipeline_mode = #tpu.pipeline_mode<synchronous>, transform_indices = @transform_3, window_bounds = array<i64: 1, 64>}, {pipeline_mode = #tpu.pipeline_mode<synchronous>, transform_indices = @transform_4, window_bounds = array<i64: 1, 64>}, {pipeline_mode = #tpu.pipeline_mode<synchronous>, transform_indices = @transform_5, window_bounds = array<i64: 64, 8>}, {pipeline_mode = #tpu.pipeline_mode<synchronous>, transform_indices = @transform_6, window_bounds = array<i64: 8, 64>}, {pipeline_mode = #tpu.pipeline_mode<synchronous>, transform_indices = @transform_7, window_bounds = array<i64: 64, 192>}, {pipeline_mode = #tpu.pipeline_mode<synchronous>, transform_indices = @transform_8, window_bounds = array<i64: 1, 192>}, {pipeline_mode = #tpu.pipeline_mode<synchronous>, transform_indices = @transform_9, window_bounds = array<i64: 32, 128>}, {pipeline_mode = #tpu.pipeline_mode<synchronous>, transform_indices = @transform_10, window_bounds = array<i64: 1, 128>}, {pipeline_mode = #tpu.pipeline_mode<synchronous>, transform_indices = @transform_11, window_bounds = array<i64: 64, 64>}, {pipeline_mode = #tpu.pipeline_mode<synchronous>, transform_indices = @transform_12, window_bounds = array<i64: 64, 1>}, {transform_indices = @transform_13, window_bounds = array<i64: 1, 64, 64>}]} {
    %c0 = arith.constant 0 : index
    %c0_0 = arith.constant 0 : index
    %c0_1 = arith.constant 0 : index
    %0 = vector.load %arg1[%c0, %c0_0, %c0_1] : memref<1x64x64xf32, #tpu.memory_space<vmem>>, vector<1x64x64xf32>
    %1 = vector.shape_cast %0 : vector<1x64x64xf32> to vector<64x64xf32>
    %c0_2 = arith.constant 0 : index
    %c0_3 = arith.constant 0 : index
    %c0_4 = arith.constant 0 : index
    %2 = vector.load %arg2[%c0_2, %c0_3, %c0_4] : memref<1x8x32xf32, #tpu.memory_space<vmem>>, vector<1x8x32xf32>
    %3 = vector.shape_cast %2 : vector<1x8x32xf32> to vector<8x32xf32>
    %c0_5 = arith.constant 0 : index
    %c0_6 = arith.constant 0 : index
    %4 = vector.load %arg3[%c0_5, %c0_6] : memref<64x64xf32, #tpu.memory_space<vmem>>, vector<64x64xf32>
    %c0_7 = arith.constant 0 : index
    %c0_8 = arith.constant 0 : index
    %5 = vector.load %arg4[%c0_7, %c0_8] : memref<1x64xf32, #tpu.memory_space<vmem>>, vector<1x64xf32>
    %c0_9 = arith.constant 0 : index
    %c0_10 = arith.constant 0 : index
    %6 = vector.load %arg5[%c0_9, %c0_10] : memref<1x64xf32, #tpu.memory_space<vmem>>, vector<1x64xf32>
    %c0_11 = arith.constant 0 : index
    %c0_12 = arith.constant 0 : index
    %7 = vector.load %arg6[%c0_11, %c0_12] : memref<64x8xf32, #tpu.memory_space<vmem>>, vector<64x8xf32>
    %c0_13 = arith.constant 0 : index
    %c0_14 = arith.constant 0 : index
    %8 = vector.load %arg7[%c0_13, %c0_14] : memref<8x64xf32, #tpu.memory_space<vmem>>, vector<8x64xf32>
    %cst = arith.constant dense<0.000000e+00> : vector<64x64xf32>
    %9 = tpu.matmul %4, %1, %cst {dimension_numbers = #tpu.dot_dimension_numbers<[1], [1], [0], [0], [0, 0, 1, 0], [], []>} : vector<64x64xf32>, vector<64x64xf32>, vector<64x64xf32> -> vector<64x64xf32>
    %cst_15 = arith.constant dense<0.000000e+00> : vector<64xf32>
    %10 = vector.multi_reduction <add>, %9, %cst_15 [0] : vector<64x64xf32> to vector<64xf32>
    %11 = vector.shape_cast %10 : vector<64xf32> to vector<1x64xf32>
    %12 = arith.mulf %9, %9 : vector<64x64xf32>
    %cst_16 = arith.constant dense<0.000000e+00> : vector<64xf32>
    %13 = vector.multi_reduction <add>, %12, %cst_16 [0] : vector<64x64xf32> to vector<64xf32>
    %14 = vector.shape_cast %13 : vector<64xf32> to vector<1x64xf32>
    %15 = tpu.concatenate %11, %14 in 0 : vector<1x64xf32>, vector<1x64xf32> -> vector<2x64xf32>
    %cst_17 = arith.constant dense<0.000000e+00> : vector<2x8xf32>
    %16 = tpu.matmul %15, %7, %cst_17 {dimension_numbers = #tpu.dot_dimension_numbers<[1], [0], [0], [1], [0, 0, 1, 1], [], []>} : vector<2x64xf32>, vector<64x8xf32>, vector<2x8xf32> -> vector<2x8xf32>
    %cst_18 = arith.constant 0.001953125 : f32
    %17 = vector.broadcast %cst_18 : f32 to vector<2x8xf32>
    %18 = arith.mulf %16, %17 : vector<2x8xf32>
    %cst_19 = arith.constant dense<0.000000e+00> : vector<2x64xf32>
    %19 = tpu.matmul %18, %8, %cst_19 {dimension_numbers = #tpu.dot_dimension_numbers<[1], [0], [0], [1], [0, 0, 1, 1], [], []>} : vector<2x8xf32>, vector<8x64xf32>, vector<2x64xf32> -> vector<2x64xf32>
    %20 = vector.extract_strided_slice %19 {offsets = [0, 0], sizes = [1, 64], strides = [1, 1]} : vector<2x64xf32> to vector<1x64xf32>
    %21 = vector.extract_strided_slice %19 {offsets = [1, 0], sizes = [1, 64], strides = [1, 1]} : vector<2x64xf32> to vector<1x64xf32>
    %22 = arith.mulf %20, %20 : vector<1x64xf32>
    %23 = arith.subf %21, %22 : vector<1x64xf32>
    %24 = vector.broadcast %20 : vector<1x64xf32> to vector<64x64xf32>
    %25 = arith.subf %9, %24 : vector<64x64xf32>
    %cst_20 = arith.constant 9.99999974E-6 : f32
    %26 = vector.broadcast %cst_20 : f32 to vector<1x64xf32>
    %27 = arith.addf %23, %26 : vector<1x64xf32>
    %28 = math.rsqrt %27 : vector<1x64xf32>
    %29 = vector.broadcast %28 : vector<1x64xf32> to vector<64x64xf32>
    %30 = arith.mulf %25, %29 : vector<64x64xf32>
    %31 = vector.broadcast %5 : vector<1x64xf32> to vector<64x64xf32>
    %32 = arith.mulf %30, %31 : vector<64x64xf32>
    %33 = vector.broadcast %6 : vector<1x64xf32> to vector<64x64xf32>
    %34 = arith.addf %32, %33 : vector<64x64xf32>
    %c0_21 = arith.constant 0 : index
    %c0_22 = arith.constant 0 : index
    %35 = vector.load %arg8[%c0_21, %c0_22] : memref<64x192xf32, #tpu.memory_space<vmem>>, vector<64x192xf32>
    %cst_23 = arith.constant dense<0.000000e+00> : vector<64x192xf32>
    %36 = tpu.matmul %34, %35, %cst_23 {dimension_numbers = #tpu.dot_dimension_numbers<[1], [0], [0], [1], [0, 0, 1, 1], [], []>} : vector<64x64xf32>, vector<64x192xf32>, vector<64x192xf32> -> vector<64x192xf32>
    %c0_24 = arith.constant 0 : index
    %c0_25 = arith.constant 0 : index
    %37 = vector.load %arg9[%c0_24, %c0_25] : memref<1x192xf32, #tpu.memory_space<vmem>>, vector<1x192xf32>
    %38 = vector.broadcast %37 : vector<1x192xf32> to vector<64x192xf32>
    %39 = arith.addf %36, %38 : vector<64x192xf32>
    %c0_26 = arith.constant 0 : index
    %c0_27 = arith.constant 0 : index
    %40 = vector.load %arg10[%c0_26, %c0_27] : memref<32x128xf32, #tpu.memory_space<vmem>>, vector<32x128xf32>
    %cst_28 = arith.constant dense<0.000000e+00> : vector<8x128xf32>
    %41 = tpu.matmul %3, %40, %cst_28 {dimension_numbers = #tpu.dot_dimension_numbers<[1], [0], [0], [1], [0, 0, 1, 1], [], []>} : vector<8x32xf32>, vector<32x128xf32>, vector<8x128xf32> -> vector<8x128xf32>
    %c0_29 = arith.constant 0 : index
    %c0_30 = arith.constant 0 : index
    %42 = vector.load %arg11[%c0_29, %c0_30] : memref<1x128xf32, #tpu.memory_space<vmem>>, vector<1x128xf32>
    %43 = vector.broadcast %42 : vector<1x128xf32> to vector<8x128xf32>
    %44 = arith.addf %41, %43 : vector<8x128xf32>
    %c0_31 = arith.constant 0 : index
    %c0_32 = arith.constant 0 : index
    %45 = vector.load %arg12[%c0_31, %c0_32] : memref<64x64xf32, #tpu.memory_space<vmem>>, vector<64x64xf32>
    %46 = vector.extract_strided_slice %39 {offsets = [0, 0], sizes = [64, 32], strides = [1, 1]} : vector<64x192xf32> to vector<64x32xf32>
    %cst_33 = arith.constant 0.176776692 : f32
    %47 = vector.broadcast %cst_33 : f32 to vector<64x32xf32>
    %48 = arith.mulf %46, %47 : vector<64x32xf32>
    %49 = vector.extract_strided_slice %39 {offsets = [0, 64], sizes = [64, 32], strides = [1, 1]} : vector<64x192xf32> to vector<64x32xf32>
    %50 = vector.extract_strided_slice %39 {offsets = [0, 128], sizes = [64, 32], strides = [1, 1]} : vector<64x192xf32> to vector<64x32xf32>
    %51 = vector.extract_strided_slice %44 {offsets = [0, 0], sizes = [8, 32], strides = [1, 1]} : vector<8x128xf32> to vector<8x32xf32>
    %52 = vector.extract_strided_slice %44 {offsets = [0, 32], sizes = [8, 32], strides = [1, 1]} : vector<8x128xf32> to vector<8x32xf32>
    %cst_34 = arith.constant dense<0.000000e+00> : vector<64x8xf32>
    %53 = tpu.matmul %48, %51, %cst_34 {dimension_numbers = #tpu.dot_dimension_numbers<[1], [1], [0], [0], [0, 0, 1, 0], [], []>} : vector<64x32xf32>, vector<8x32xf32>, vector<64x8xf32> -> vector<64x8xf32>
    %cst_35 = arith.constant dense<0.000000e+00> : vector<64x64xf32>
    %54 = tpu.matmul %48, %49, %cst_35 {dimension_numbers = #tpu.dot_dimension_numbers<[1], [1], [0], [0], [0, 0, 1, 0], [], []>} : vector<64x32xf32>, vector<64x32xf32>, vector<64x64xf32> -> vector<64x64xf32>
    %cst_36 = arith.constant dense<0xFF800000> : vector<64xf32>
    %55 = vector.multi_reduction <maximumf>, %53, %cst_36 [1] : vector<64x8xf32> to vector<64xf32>
    %56 = vector.shape_cast %55 : vector<64xf32> to vector<64x1xf32>
    %cst_37 = arith.constant dense<0xFF800000> : vector<64xf32>
    %57 = vector.multi_reduction <maximumf>, %54, %cst_37 [1] : vector<64x64xf32> to vector<64xf32>
    %58 = vector.shape_cast %57 : vector<64xf32> to vector<64x1xf32>
    %59 = arith.maximumf %56, %58 : vector<64x1xf32>
    %60 = vector.broadcast %59 : vector<64x1xf32> to vector<64x8xf32>
    %61 = arith.subf %53, %60 : vector<64x8xf32>
    %62 = math.exp %61 : vector<64x8xf32>
    %63 = vector.broadcast %59 : vector<64x1xf32> to vector<64x64xf32>
    %64 = arith.subf %54, %63 : vector<64x64xf32>
    %65 = math.exp %64 : vector<64x64xf32>
    %cst_38 = arith.constant dense<0.000000e+00> : vector<64xf32>
    %66 = vector.multi_reduction <add>, %62, %cst_38 [1] : vector<64x8xf32> to vector<64xf32>
    %67 = vector.shape_cast %66 : vector<64xf32> to vector<64x1xf32>
    %cst_39 = arith.constant dense<0.000000e+00> : vector<64xf32>
    %68 = vector.multi_reduction <add>, %65, %cst_39 [1] : vector<64x64xf32> to vector<64xf32>
    %69 = vector.shape_cast %68 : vector<64xf32> to vector<64x1xf32>
    %70 = arith.addf %67, %69 : vector<64x1xf32>
    %71 = tpu.reciprocal %70 {approx = true} : vector<64x1xf32> -> vector<64x1xf32>
    %cst_40 = arith.constant dense<0.000000e+00> : vector<64x32xf32>
    %72 = tpu.matmul %62, %52, %cst_40 {dimension_numbers = #tpu.dot_dimension_numbers<[1], [0], [0], [1], [0, 0, 1, 1], [], []>} : vector<64x8xf32>, vector<8x32xf32>, vector<64x32xf32> -> vector<64x32xf32>
    %cst_41 = arith.constant dense<0.000000e+00> : vector<64x32xf32>
    %73 = tpu.matmul %65, %50, %cst_41 {dimension_numbers = #tpu.dot_dimension_numbers<[1], [0], [0], [1], [0, 0, 1, 1], [], []>} : vector<64x64xf32>, vector<64x32xf32>, vector<64x32xf32> -> vector<64x32xf32>
    %74 = arith.addf %72, %73 : vector<64x32xf32>
    %75 = vector.broadcast %71 : vector<64x1xf32> to vector<64x32xf32>
    %76 = arith.mulf %74, %75 : vector<64x32xf32>
    %77 = vector.extract_strided_slice %45 {offsets = [0, 0], sizes = [64, 32], strides = [1, 1]} : vector<64x64xf32> to vector<64x32xf32>
    %cst_42 = arith.constant dense<0.000000e+00> : vector<64x64xf32>
    %78 = tpu.matmul %77, %76, %cst_42 {dimension_numbers = #tpu.dot_dimension_numbers<[1], [1], [0], [0], [0, 0, 1, 0], [], []>} : vector<64x32xf32>, vector<64x32xf32>, vector<64x64xf32> -> vector<64x64xf32>
    %79 = vector.extract_strided_slice %39 {offsets = [0, 32], sizes = [64, 32], strides = [1, 1]} : vector<64x192xf32> to vector<64x32xf32>
    %cst_43 = arith.constant 0.176776692 : f32
    %80 = vector.broadcast %cst_43 : f32 to vector<64x32xf32>
    %81 = arith.mulf %79, %80 : vector<64x32xf32>
    %82 = vector.extract_strided_slice %39 {offsets = [0, 96], sizes = [64, 32], strides = [1, 1]} : vector<64x192xf32> to vector<64x32xf32>
    %83 = vector.extract_strided_slice %39 {offsets = [0, 160], sizes = [64, 32], strides = [1, 1]} : vector<64x192xf32> to vector<64x32xf32>
    %84 = vector.extract_strided_slice %44 {offsets = [0, 64], sizes = [8, 32], strides = [1, 1]} : vector<8x128xf32> to vector<8x32xf32>
    %85 = vector.extract_strided_slice %44 {offsets = [0, 96], sizes = [8, 32], strides = [1, 1]} : vector<8x128xf32> to vector<8x32xf32>
    %cst_44 = arith.constant dense<0.000000e+00> : vector<64x8xf32>
    %86 = tpu.matmul %81, %84, %cst_44 {dimension_numbers = #tpu.dot_dimension_numbers<[1], [1], [0], [0], [0, 0, 1, 0], [], []>} : vector<64x32xf32>, vector<8x32xf32>, vector<64x8xf32> -> vector<64x8xf32>
    %cst_45 = arith.constant dense<0.000000e+00> : vector<64x64xf32>
    %87 = tpu.matmul %81, %82, %cst_45 {dimension_numbers = #tpu.dot_dimension_numbers<[1], [1], [0], [0], [0, 0, 1, 0], [], []>} : vector<64x32xf32>, vector<64x32xf32>, vector<64x64xf32> -> vector<64x64xf32>
    %cst_46 = arith.constant dense<0xFF800000> : vector<64xf32>
    %88 = vector.multi_reduction <maximumf>, %86, %cst_46 [1] : vector<64x8xf32> to vector<64xf32>
    %89 = vector.shape_cast %88 : vector<64xf32> to vector<64x1xf32>
    %cst_47 = arith.constant dense<0xFF800000> : vector<64xf32>
    %90 = vector.multi_reduction <maximumf>, %87, %cst_47 [1] : vector<64x64xf32> to vector<64xf32>
    %91 = vector.shape_cast %90 : vector<64xf32> to vector<64x1xf32>
    %92 = arith.maximumf %89, %91 : vector<64x1xf32>
    %93 = vector.broadcast %92 : vector<64x1xf32> to vector<64x8xf32>
    %94 = arith.subf %86, %93 : vector<64x8xf32>
    %95 = math.exp %94 : vector<64x8xf32>
    %96 = vector.broadcast %92 : vector<64x1xf32> to vector<64x64xf32>
    %97 = arith.subf %87, %96 : vector<64x64xf32>
    %98 = math.exp %97 : vector<64x64xf32>
    %cst_48 = arith.constant dense<0.000000e+00> : vector<64xf32>
    %99 = vector.multi_reduction <add>, %95, %cst_48 [1] : vector<64x8xf32> to vector<64xf32>
    %100 = vector.shape_cast %99 : vector<64xf32> to vector<64x1xf32>
    %cst_49 = arith.constant dense<0.000000e+00> : vector<64xf32>
    %101 = vector.multi_reduction <add>, %98, %cst_49 [1] : vector<64x64xf32> to vector<64xf32>
    %102 = vector.shape_cast %101 : vector<64xf32> to vector<64x1xf32>
    %103 = arith.addf %100, %102 : vector<64x1xf32>
    %104 = tpu.reciprocal %103 {approx = true} : vector<64x1xf32> -> vector<64x1xf32>
    %cst_50 = arith.constant dense<0.000000e+00> : vector<64x32xf32>
    %105 = tpu.matmul %95, %85, %cst_50 {dimension_numbers = #tpu.dot_dimension_numbers<[1], [0], [0], [1], [0, 0, 1, 1], [], []>} : vector<64x8xf32>, vector<8x32xf32>, vector<64x32xf32> -> vector<64x32xf32>
    %cst_51 = arith.constant dense<0.000000e+00> : vector<64x32xf32>
    %106 = tpu.matmul %98, %83, %cst_51 {dimension_numbers = #tpu.dot_dimension_numbers<[1], [0], [0], [1], [0, 0, 1, 1], [], []>} : vector<64x64xf32>, vector<64x32xf32>, vector<64x32xf32> -> vector<64x32xf32>
    %107 = arith.addf %105, %106 : vector<64x32xf32>
    %108 = vector.broadcast %104 : vector<64x1xf32> to vector<64x32xf32>
    %109 = arith.mulf %107, %108 : vector<64x32xf32>
    %110 = vector.extract_strided_slice %45 {offsets = [0, 32], sizes = [64, 32], strides = [1, 1]} : vector<64x64xf32> to vector<64x32xf32>
    %cst_52 = arith.constant dense<0.000000e+00> : vector<64x64xf32>
    %111 = tpu.matmul %110, %109, %cst_52 {dimension_numbers = #tpu.dot_dimension_numbers<[1], [1], [0], [0], [0, 0, 1, 0], [], []>} : vector<64x32xf32>, vector<64x32xf32>, vector<64x64xf32> -> vector<64x64xf32>
    %112 = arith.addf %78, %111 : vector<64x64xf32>
    %113 = arith.addf %1, %112 : vector<64x64xf32>
    %c0_53 = arith.constant 0 : index
    %c0_54 = arith.constant 0 : index
    %114 = vector.load %arg13[%c0_53, %c0_54] : memref<64x1xf32, #tpu.memory_space<vmem>>, vector<64x1xf32>
    %115 = vector.broadcast %114 : vector<64x1xf32> to vector<64x64xf32>
    %116 = arith.addf %113, %115 : vector<64x64xf32>
    %c0_55 = arith.constant 0 : index
    %c0_56 = arith.constant 0 : index
    %c0_57 = arith.constant 0 : index
    %117 = vector.load %arg14[%c0_55, %c0_56, %c0_57] : memref<1x64x64xf32, #tpu.memory_space<vmem>>, vector<1x64x64xf32>
    %118 = vector.shape_cast %117 : vector<1x64x64xf32> to vector<64x64xf32>
    %119 = vector.shape_cast %116 : vector<64x64xf32> to vector<1x64x64xf32>
    tpu.vector_store %arg14[%c0_55, %c0_56, %c0_57], %119 {strides = array<i32>} : memref<1x64x64xf32, #tpu.memory_space<vmem>>, vector<1x64x64xf32>,
    return
  }
  func.func @transform_0(%arg0: i32) -> (i32, i32, i32) {
    %c0_i32 = arith.constant 0 : i32
    %c0_i32_0 = arith.constant 0 : i32
    %c0_i32_1 = arith.constant 0 : i32
    return %arg0, %c0_i32, %c0_i32_0 : i32, i32, i32
  }
  func.func @transform_1(%arg0: i32) -> (i32, i32, i32) {
    %c0_i32 = arith.constant 0 : i32
    %c0_i32_0 = arith.constant 0 : i32
    %c0_i32_1 = arith.constant 0 : i32
    return %arg0, %c0_i32, %c0_i32_0 : i32, i32, i32
  }
  func.func @transform_2(%arg0: i32) -> (i32, i32) {
    %c0_i32 = arith.constant 0 : i32
    %c0_i32_0 = arith.constant 0 : i32
    %c0_i32_1 = arith.constant 0 : i32
    return %c0_i32, %c0_i32_0 : i32, i32
  }
  func.func @transform_3(%arg0: i32) -> (i32, i32) {
    %c0_i32 = arith.constant 0 : i32
    %c0_i32_0 = arith.constant 0 : i32
    %c0_i32_1 = arith.constant 0 : i32
    return %c0_i32, %c0_i32_0 : i32, i32
  }
  func.func @transform_4(%arg0: i32) -> (i32, i32) {
    %c0_i32 = arith.constant 0 : i32
    %c0_i32_0 = arith.constant 0 : i32
    %c0_i32_1 = arith.constant 0 : i32
    return %c0_i32, %c0_i32_0 : i32, i32
  }
  func.func @transform_5(%arg0: i32) -> (i32, i32) {
    %c0_i32 = arith.constant 0 : i32
    %c0_i32_0 = arith.constant 0 : i32
    %c0_i32_1 = arith.constant 0 : i32
    return %c0_i32, %c0_i32_0 : i32, i32
  }
  func.func @transform_6(%arg0: i32) -> (i32, i32) {
    %c0_i32 = arith.constant 0 : i32
    %c0_i32_0 = arith.constant 0 : i32
    %c0_i32_1 = arith.constant 0 : i32
    return %c0_i32, %c0_i32_0 : i32, i32
  }
  func.func @transform_7(%arg0: i32) -> (i32, i32) {
    %c0_i32 = arith.constant 0 : i32
    %c0_i32_0 = arith.constant 0 : i32
    %c0_i32_1 = arith.constant 0 : i32
    return %c0_i32, %c0_i32_0 : i32, i32
  }
  func.func @transform_8(%arg0: i32) -> (i32, i32) {
    %c0_i32 = arith.constant 0 : i32
    %c0_i32_0 = arith.constant 0 : i32
    %c0_i32_1 = arith.constant 0 : i32
    return %c0_i32, %c0_i32_0 : i32, i32
  }
  func.func @transform_9(%arg0: i32) -> (i32, i32) {
    %c0_i32 = arith.constant 0 : i32
    %c0_i32_0 = arith.constant 0 : i32
    %c0_i32_1 = arith.constant 0 : i32
    return %c0_i32, %c0_i32_0 : i32, i32
  }
  func.func @transform_10(%arg0: i32) -> (i32, i32) {
    %c0_i32 = arith.constant 0 : i32
    %c0_i32_0 = arith.constant 0 : i32
    %c0_i32_1 = arith.constant 0 : i32
    return %c0_i32, %c0_i32_0 : i32, i32
  }
  func.func @transform_11(%arg0: i32) -> (i32, i32) {
    %c0_i32 = arith.constant 0 : i32
    %c0_i32_0 = arith.constant 0 : i32
    %c0_i32_1 = arith.constant 0 : i32
    return %c0_i32, %c0_i32_0 : i32, i32
  }
  func.func @transform_12(%arg0: i32) -> (i32, i32) {
    %c0_i32 = arith.constant 0 : i32
    %c0_i32_0 = arith.constant 0 : i32
    %c0_i32_1 = arith.constant 0 : i32
    return %c0_i32, %c0_i32_0 : i32, i32
  }
  func.func @transform_13(%arg0: i32) -> (i32, i32, i32) {
    %c0_i32 = arith.constant 0 : i32
    %c0_i32_0 = arith.constant 0 : i32
    %c0_i32_1 = arith.constant 0 : i32
    return %arg0, %c0_i32, %c0_i32_0 : i32, i32, i32
  }
}

</mosaic_0001>

<llo_original>
// kernel: adm_attention_block.1
$region0: #{adm_attention_block.1}
  #allocation0 [shape = 'u32[]', space=smem, size = 0x4, offset = 0x4, fixed_abs, tag = 'smem constant byte address 0x4 - core index']
  #allocation1 [shape = 'u32[72,128]{1,0:T(1,128)}', space=vmem, size = 0x9000, scoped, tag = 'internal scratch']
  %s0 = inlined_call_operand.vmem [shape: f32[2,64,64], index: 0, kind: input, shape index: {}]
  %s1 = inlined_call_operand.vmem [shape: f32[2,8,32], index: 1, kind: input, shape index: {}]
  %s2 = inlined_call_operand.vmem [shape: f32[64,64], index: 2, kind: input, shape index: {}]
  %s3 = inlined_call_operand.vmem [shape: f32[1,64], index: 3, kind: input, shape index: {}]
  %s4 = inlined_call_operand.vmem [shape: f32[1,64], index: 4, kind: input, shape index: {}]
  %s5 = inlined_call_operand.vmem [shape: f32[64,8], index: 5, kind: input, shape index: {}]
  %s6 = inlined_call_operand.vmem [shape: f32[8,64], index: 6, kind: input, shape index: {}]
  %s7 = inlined_call_operand.vmem [shape: f32[64,192], index: 7, kind: input, shape index: {}]
  %s8 = inlined_call_operand.vmem [shape: f32[1,192], index: 8, kind: input, shape index: {}]
  %s9 = inlined_call_operand.vmem [shape: f32[32,128], index: 9, kind: input, shape index: {}]
  %s10 = inlined_call_operand.vmem [shape: f32[1,128], index: 10, kind: input, shape index: {}]
  %s11 = inlined_call_operand.vmem [shape: f32[64,64], index: 11, kind: input, shape index: {}]
  %s12 = inlined_call_operand.vmem [shape: f32[64,1], index: 12, kind: input, shape index: {}]
  %s13 = inlined_call_operand.vmem [shape: f32[2,64,64], index: 13, kind: output, shape index: {}]
  %s14 = sld [smem:[#allocation0]]
  $region85: #{adm_attention_block.1} parent=0
    _
  %s16 = ssub.s32 1, %s14
  %s17 = scalar_select 0, %s16, %s14
  loop: start=0, step=1, limit=4
  $region2: #{adm_attention_block.1} parent=0 // loop_pre_header
    _
  $region3: #{adm_attention_block.1} parent=0 // loop_header
    %s19 = sphi 0, %s23
    %p20 = scmp.ge.s32.totalorder %s19, 4
    %s29 = sphi 0, %s31
    %s32 = sphi 0, %s29
    %s33 = sphi 0, %s32
    %s49 = sphi 0, %s33
    %s55 = sphi 0, %s57
    %s58 = sphi 0, %s55
    %s59 = sphi 0, %s58
    %s75 = sphi 0, %s59
    %s79 = sphi 0, %s79
    %s81 = sphi 0, %s79
    %s82 = sphi 0, %s81
    %s96 = sphi 0, %s82
    %s100 = sphi 0, %s100
    %s102 = sphi 0, %s100
    %s103 = sphi 0, %s102
    %s117 = sphi 0, %s103
    %s121 = sphi 0, %s121
    %s123 = sphi 0, %s121
    %s124 = sphi 0, %s123
    %s138 = sphi 0, %s124
    %s142 = sphi 0, %s142
    %s144 = sphi 0, %s142
    %s145 = sphi 0, %s144
    %s159 = sphi 0, %s145
    %s163 = sphi 0, %s163
    %s165 = sphi 0, %s163
    %s166 = sphi 0, %s165
    %s180 = sphi 0, %s166
    %s184 = sphi 0, %s184
    %s186 = sphi 0, %s184
    %s187 = sphi 0, %s186
    %s201 = sphi 0, %s187
    %s205 = sphi 0, %s205
    %s207 = sphi 0, %s205
    %s208 = sphi 0, %s207
    %s222 = sphi 0, %s208
    %s226 = sphi 0, %s226
    %s228 = sphi 0, %s226
    %s229 = sphi 0, %s228
    %s243 = sphi 0, %s229
    %s247 = sphi 0, %s247
    %s249 = sphi 0, %s247
    %s250 = sphi 0, %s249
    %s264 = sphi 0, %s250
    %s268 = sphi 0, %s268
    %s270 = sphi 0, %s268
    %s271 = sphi 0, %s270
    %s285 = sphi 0, %s271
    %s289 = sphi 0, %s289
    %s291 = sphi 0, %s289
    %s292 = sphi 0, %s291
    %s306 = sphi 0, %s292
    %s312 = sphi 0, %s314
    %s315 = sphi 0, %s312
    %s316 = sphi 0, %s315
    %s332 = sphi 0, %s316
  $region4: #{adm_attention_block.1} parent=0 // loop_header_branch
    %22 = sbr.rel (%p20) target = $region8
  $region5: #{adm_attention_block.1} parent=0 // loop_body
    %s24 = ssub.s32 %s19, 1
    %s25 = ssub.s32 %s19, 2
    %s26 = sadd.s32 %s19, 1
    %s27 = ssub.s32 %s19, %s26
    %p28 = scmp.eq.s32.totalorder %s27, 0
    %s30 = sadd.s32 %s29, 1
    %s31 = scalar_select %p28, %s29, %s30
    %p34 = pneg %p28
    %p35 = scmp.eq.s32.totalorder %s19, 1
    %p36 = por %p34, %p35
    %p37 = scmp.ne.s32.totalorder %s29, %s32
    %p38 = scmp.eq.s32.totalorder %s19, 0
    %p39 = por %p37, %p38
    %p40 = scmp.ne.s32.totalorder %s29, %s32
    %p41 = scmp.eq.s32.totalorder %s24, 1
    %p42 = por %p40, %p41
    %p43 = scmp.ne.s32.totalorder %s32, %s33
    %p44 = scmp.eq.s32.totalorder %s24, 0
    %p45 = por %p43, %p44
    %p46 = scmp.ne.s32.totalorder %s32, %s33
    %p47 = scmp.eq.s32.totalorder %s25, 1
    %p48 = por %p46, %p47
    %p50 = scmp.ne.s32.totalorder %s33, %s49
    %p51 = scmp.eq.s32.totalorder %s25, 0
    %p52 = por %p50, %p51
    %s53 = ssub.s32 %s19, %s26
    %p54 = scmp.eq.s32.totalorder %s53, 0
    %s56 = sadd.s32 %s55, 1
    %s57 = scalar_select %p54, %s55, %s56
    %p60 = pneg %p54
    %p61 = scmp.eq.s32.totalorder %s19, 1
    %p62 = por %p60, %p61
    %p63 = scmp.ne.s32.totalorder %s55, %s58
    %p64 = scmp.eq.s32.totalorder %s19, 0
    %p65 = por %p63, %p64
    %p66 = scmp.ne.s32.totalorder %s55, %s58
    %p67 = scmp.eq.s32.totalorder %s24, 1
    %p68 = por %p66, %p67
    %p69 = scmp.ne.s32.totalorder %s58, %s59
    %p70 = scmp.eq.s32.totalorder %s24, 0
    %p71 = por %p69, %p70
    %p72 = scmp.ne.s32.totalorder %s58, %s59
    %p73 = scmp.eq.s32.totalorder %s25, 1
    %p74 = por %p72, %p73
    %p76 = scmp.ne.s32.totalorder %s59, %s75
    %p77 = scmp.eq.s32.totalorder %s25, 0
    %p78 = por %p76, %p77
    %s80 = sadd.s32 %s79, 1
    %p83 = scmp.eq.s32.totalorder %s19, 1
    %p84 = scmp.ne.s32.totalorder %s79, %s81
    %p85 = scmp.eq.s32.totalorder %s19, 0
    %p86 = por %p84, %p85
    %p87 = scmp.ne.s32.totalorder %s79, %s81
    %p88 = scmp.eq.s32.totalorder %s24, 1
    %p89 = por %p87, %p88
    %p90 = scmp.ne.s32.totalorder %s81, %s82
    %p91 = scmp.eq.s32.totalorder %s24, 0
    %p92 = por %p90, %p91
    %p93 = scmp.ne.s32.totalorder %s81, %s82
    %p94 = scmp.eq.s32.totalorder %s25, 1
    %p95 = por %p93, %p94
    %p97 = scmp.ne.s32.totalorder %s82, %s96
    %p98 = scmp.eq.s32.totalorder %s25, 0
    %p99 = por %p97, %p98
    %s101 = sadd.s32 %s100, 1
    %p104 = scmp.eq.s32.totalorder %s19, 1
    %p105 = scmp.ne.s32.totalorder %s100, %s102
    %p106 = scmp.eq.s32.totalorder %s19, 0
    %p107 = por %p105, %p106
    %p108 = scmp.ne.s32.totalorder %s100, %s102
    %p109 = scmp.eq.s32.totalorder %s24, 1
    %p110 = por %p108, %p109
    %p111 = scmp.ne.s32.totalorder %s102, %s103
    %p112 = scmp.eq.s32.totalorder %s24, 0
    %p113 = por %p111, %p112
    %p114 = scmp.ne.s32.totalorder %s102, %s103
    %p115 = scmp.eq.s32.totalorder %s25, 1
    %p116 = por %p114, %p115
    %p118 = scmp.ne.s32.totalorder %s103, %s117
    %p119 = scmp.eq.s32.totalorder %s25, 0
    %p120 = por %p118, %p119
    %s122 = sadd.s32 %s121, 1
    %p125 = scmp.eq.s32.totalorder %s19, 1
    %p126 = scmp.ne.s32.totalorder %s121, %s123
    %p127 = scmp.eq.s32.totalorder %s19, 0
    %p128 = por %p126, %p127
    %p129 = scmp.ne.s32.totalorder %s121, %s123
    %p130 = scmp.eq.s32.totalorder %s24, 1
    %p131 = por %p129, %p130
    %p132 = scmp.ne.s32.totalorder %s123, %s124
    %p133 = scmp.eq.s32.totalorder %s24, 0
    %p134 = por %p132, %p133
    %p135 = scmp.ne.s32.totalorder %s123, %s124
    %p136 = scmp.eq.s32.totalorder %s25, 1
    %p137 = por %p135, %p136
    %p139 = scmp.ne.s32.totalorder %s124, %s138
    %p140 = scmp.eq.s32.totalorder %s25, 0
    %p141 = por %p139, %p140
    %s143 = sadd.s32 %s142, 1
    %p146 = scmp.eq.s32.totalorder %s19, 1
    %p147 = scmp.ne.s32.totalorder %s142, %s144
    %p148 = scmp.eq.s32.totalorder %s19, 0
    %p149 = por %p147, %p148
    %p150 = scmp.ne.s32.totalorder %s142, %s144
    %p151 = scmp.eq.s32.totalorder %s24, 1
    %p152 = por %p150, %p151
    %p153 = scmp.ne.s32.totalorder %s144, %s145
    %p154 = scmp.eq.s32.totalorder %s24, 0
    %p155 = por %p153, %p154
    %p156 = scmp.ne.s32.totalorder %s144, %s145
    %p157 = scmp.eq.s32.totalorder %s25, 1
    %p158 = por %p156, %p157
    %p160 = scmp.ne.s32.totalorder %s145, %s159
    %p161 = scmp.eq.s32.totalorder %s25, 0
    %p162 = por %p160, %p161
    %s164 = sadd.s32 %s163, 1
    %p167 = scmp.eq.s32.totalorder %s19, 1
    %p168 = scmp.ne.s32.totalorder %s163, %s165
    %p169 = scmp.eq.s32.totalorder %s19, 0
    %p170 = por %p168, %p169
    %p171 = scmp.ne.s32.totalorder %s163, %s165
    %p172 = scmp.eq.s32.totalorder %s24, 1
    %p173 = por %p171, %p172
    %p174 = scmp.ne.s32.totalorder %s165, %s166
    %p175 = scmp.eq.s32.totalorder %s24, 0
    %p176 = por %p174, %p175
    %p177 = scmp.ne.s32.totalorder %s165, %s166
    %p178 = scmp.eq.s32.totalorder %s25, 1
    %p179 = por %p177, %p178
    %p181 = scmp.ne.s32.totalorder %s166, %s180
    %p182 = scmp.eq.s32.totalorder %s25, 0
    %p183 = por %p181, %p182
    %s185 = sadd.s32 %s184, 1
    %p188 = scmp.eq.s32.totalorder %s19, 1
    %p189 = scmp.ne.s32.totalorder %s184, %s186
    %p190 = scmp.eq.s32.totalorder %s19, 0
    %p191 = por %p189, %p190
    %p192 = scmp.ne.s32.totalorder %s184, %s186
    %p193 = scmp.eq.s32.totalorder %s24, 1
    %p194 = por %p192, %p193
    %p195 = scmp.ne.s32.totalorder %s186, %s187
    %p196 = scmp.eq.s32.totalorder %s24, 0
    %p197 = por %p195, %p196
    %p198 = scmp.ne.s32.totalorder %s186, %s187
    %p199 = scmp.eq.s32.totalorder %s25, 1
    %p200 = por %p198, %p199
    %p202 = scmp.ne.s32.totalorder %s187, %s201
    %p203 = scmp.eq.s32.totalorder %s25, 0
    %p204 = por %p202, %p203
    %s206 = sadd.s32 %s205, 1
    %p209 = scmp.eq.s32.totalorder %s19, 1
    %p210 = scmp.ne.s32.totalorder %s205, %s207
    %p211 = scmp.eq.s32.totalorder %s19, 0
    %p212 = por %p210, %p211
    %p213 = scmp.ne.s32.totalorder %s205, %s207
    %p214 = scmp.eq.s32.totalorder %s24, 1
    %p215 = por %p213, %p214
    %p216 = scmp.ne.s32.totalorder %s207, %s208
    %p217 = scmp.eq.s32.totalorder %s24, 0
    %p218 = por %p216, %p217
    %p219 = scmp.ne.s32.totalorder %s207, %s208
    %p220 = scmp.eq.s32.totalorder %s25, 1
    %p221 = por %p219, %p220
    %p223 = scmp.ne.s32.totalorder %s208, %s222
    %p224 = scmp.eq.s32.totalorder %s25, 0
    %p225 = por %p223, %p224
    %s227 = sadd.s32 %s226, 1
    %p230 = scmp.eq.s32.totalorder %s19, 1
    %p231 = scmp.ne.s32.totalorder %s226, %s228
    %p232 = scmp.eq.s32.totalorder %s19, 0
    %p233 = por %p231, %p232
    %p234 = scmp.ne.s32.totalorder %s226, %s228
    %p235 = scmp.eq.s32.totalorder %s24, 1
    %p236 = por %p234, %p235
    %p237 = scmp.ne.s32.totalorder %s228, %s229
    %p238 = scmp.eq.s32.totalorder %s24, 0
    %p239 = por %p237, %p238
    %p240 = scmp.ne.s32.totalorder %s228, %s229
    %p241 = scmp.eq.s32.totalorder %s25, 1
    %p242 = por %p240, %p241
    %p244 = scmp.ne.s32.totalorder %s229, %s243
    %p245 = scmp.eq.s32.totalorder %s25, 0
    %p246 = por %p244, %p245
    %s248 = sadd.s32 %s247, 1
    %p251 = scmp.eq.s32.totalorder %s19, 1
    %p252 = scmp.ne.s32.totalorder %s247, %s249
    %p253 = scmp.eq.s32.totalorder %s19, 0
    %p254 = por %p252, %p253
    %p255 = scmp.ne.s32.totalorder %s247, %s249
    %p256 = scmp.eq.s32.totalorder %s24, 1
    %p257 = por %p255, %p256
    %p258 = scmp.ne.s32.totalorder %s249, %s250
    %p259 = scmp.eq.s32.totalorder %s24, 0
    %p260 = por %p258, %p259
    %p261 = scmp.ne.s32.totalorder %s249, %s250
    %p262 = scmp.eq.s32.totalorder %s25, 1
    %p263 = por %p261, %p262
    %p265 = scmp.ne.s32.totalorder %s250, %s264
    %p266 = scmp.eq.s32.totalorder %s25, 0
    %p267 = por %p265, %p266
    %s269 = sadd.s32 %s268, 1
    %p272 = scmp.eq.s32.totalorder %s19, 1
    %p273 = scmp.ne.s32.totalorder %s268, %s270
    %p274 = scmp.eq.s32.totalorder %s19, 0
    %p275 = por %p273, %p274
    %p276 = scmp.ne.s32.totalorder %s268, %s270
    %p277 = scmp.eq.s32.totalorder %s24, 1
    %p278 = por %p276, %p277
    %p279 = scmp.ne.s32.totalorder %s270, %s271
    %p280 = scmp.eq.s32.totalorder %s24, 0
    %p281 = por %p279, %p280
    %p282 = scmp.ne.s32.totalorder %s270, %s271
    %p283 = scmp.eq.s32.totalorder %s25, 1
    %p284 = por %p282, %p283
    %p286 = scmp.ne.s32.totalorder %s271, %s285
    %p287 = scmp.eq.s32.totalorder %s25, 0
    %p288 = por %p286, %p287
    %s290 = sadd.s32 %s289, 1
    %p293 = scmp.eq.s32.totalorder %s19, 1
    %p294 = scmp.ne.s32.totalorder %s289, %s291
    %p295 = scmp.eq.s32.totalorder %s19, 0
    %p296 = por %p294, %p295
    %p297 = scmp.ne.s32.totalorder %s289, %s291
    %p298 = scmp.eq.s32.totalorder %s24, 1
    %p299 = por %p297, %p298
    %p300 = scmp.ne.s32.totalorder %s291, %s292
    %p301 = scmp.eq.s32.totalorder %s24, 0
    %p302 = por %p300, %p301
    %p303 = scmp.ne.s32.totalorder %s291, %s292
    %p304 = scmp.eq.s32.totalorder %s25, 1
    %p305 = por %p303, %p304
    %p307 = scmp.ne.s32.totalorder %s292, %s306
    %p308 = scmp.eq.s32.totalorder %s25, 0
    %p309 = por %p307, %p308
    %s310 = ssub.s32 %s19, %s26
    %p311 = scmp.eq.s32.totalorder %s310, 0
    %s313 = sadd.s32 %s312, 1
    %s314 = scalar_select %p311, %s312, %s313
    %p317 = pneg %p311
    %p318 = scmp.eq.s32.totalorder %s19, 1
    %p319 = por %p317, %p318
    %p320 = scmp.ne.s32.totalorder %s312, %s315
    %p321 = scmp.eq.s32.totalorder %s19, 0
    %p322 = por %p320, %p321
    %p323 = scmp.ne.s32.totalorder %s312, %s315
    %p324 = scmp.eq.s32.totalorder %s24, 1
    %p325 = por %p323, %p324
    %p326 = scmp.ne.s32.totalorder %s315, %s316
    %p327 = scmp.eq.s32.totalorder %s24, 0
    %p328 = por %p326, %p327
    %p329 = scmp.ne.s32.totalorder %s315, %s316
    %p330 = scmp.eq.s32.totalorder %s25, 1
    %p331 = por %p329, %p330
    %p333 = scmp.ne.s32.totalorder %s316, %s332
    %p334 = scmp.eq.s32.totalorder %s25, 0
    %p335 = por %p333, %p334
    %p336 = scmp.le.s32.totalorder 1, %s19
    %p337 = scmp.lt.s32.totalorder %s19, 3
    %p338 = pnand %p336, %p337
    %p339 = pneg %p338
    // Predicated region
    $region9: #{adm_attention_block.1} parent=5 // pred_check
      _
    $region10: #{adm_attention_block.1} parent=5 // pred_check_branch
      %341 = sbr.rel (%p338) target = $region12
    $region11: #{adm_attention_block.1} parent=5 // pred_region
      %s342 = ssub.s32 %s19, 1
      // Predicated region
      $region13: #{adm_attention_block.1} parent=11 // pred_check
        %p343 = pneg %p92
      $region14: #{adm_attention_block.1} parent=11 // pred_check_branch
        %345 = sbr.rel (%p343) target = $region16
      $region15: #{adm_attention_block.1} parent=11 // pred_region
        _
      $region16: #{adm_attention_block.1} parent=11 // pred_fallthru
        _
      // Predicated region
      $region17: #{adm_attention_block.1} parent=11 // pred_check
        %p346 = pneg %p113
      $region18: #{adm_attention_block.1} parent=11 // pred_check_branch
        %348 = sbr.rel (%p346) target = $region20
      $region19: #{adm_attention_block.1} parent=11 // pred_region
        _
      $region20: #{adm_attention_block.1} parent=11 // pred_fallthru
        _
      // Predicated region
      $region21: #{adm_attention_block.1} parent=11 // pred_check
        %p349 = pneg %p134
      $region22: #{adm_attention_block.1} parent=11 // pred_check_branch
        %351 = sbr.rel (%p349) target = $region24
      $region23: #{adm_attention_block.1} parent=11 // pred_region
        _
      $region24: #{adm_attention_block.1} parent=11 // pred_fallthru
        _
      // Predicated region
      $region25: #{adm_attention_block.1} parent=11 // pred_check
        %p352 = pneg %p155
      $region26: #{adm_attention_block.1} parent=11 // pred_check_branch
        %354 = sbr.rel (%p352) target = $region28
      $region27: #{adm_attention_block.1} parent=11 // pred_region
        _
      $region28: #{adm_attention_block.1} parent=11 // pred_fallthru
        _
      // Predicated region
      $region29: #{adm_attention_block.1} parent=11 // pred_check
        %p355 = pneg %p176
      $region30: #{adm_attention_block.1} parent=11 // pred_check_branch
        %357 = sbr.rel (%p355) target = $region32
      $region31: #{adm_attention_block.1} parent=11 // pred_region
        _
      $region32: #{adm_attention_block.1} parent=11 // pred_fallthru
        _
      // Predicated region
      $region33: #{adm_attention_block.1} parent=11 // pred_check
        %p358 = pneg %p197
      $region34: #{adm_attention_block.1} parent=11 // pred_check_branch
        %360 = sbr.rel (%p358) target = $region36
      $region35: #{adm_attention_block.1} parent=11 // pred_region
        _
      $region36: #{adm_attention_block.1} parent=11 // pred_fallthru
        _
      // Predicated region
      $region37: #{adm_attention_block.1} parent=11 // pred_check
        %p361 = pneg %p218
      $region38: #{adm_attention_block.1} parent=11 // pred_check_branch
        %363 = sbr.rel (%p361) target = $region40
      $region39: #{adm_attention_block.1} parent=11 // pred_region
        _
      $region40: #{adm_attention_block.1} parent=11 // pred_fallthru
        _
      // Predicated region
      $region41: #{adm_attention_block.1} parent=11 // pred_check
        %p364 = pneg %p239
      $region42: #{adm_attention_block.1} parent=11 // pred_check_branch
        %366 = sbr.rel (%p364) target = $region44
      $region43: #{adm_attention_block.1} parent=11 // pred_region
        _
      $region44: #{adm_attention_block.1} parent=11 // pred_fallthru
        _
      // Predicated region
      $region45: #{adm_attention_block.1} parent=11 // pred_check
        %p367 = pneg %p260
      $region46: #{adm_attention_block.1} parent=11 // pred_check_branch
        %369 = sbr.rel (%p367) target = $region48
      $region47: #{adm_attention_block.1} parent=11 // pred_region
        _
      $region48: #{adm_attention_block.1} parent=11 // pred_fallthru
        _
      // Predicated region
      $region49: #{adm_attention_block.1} parent=11 // pred_check
        %p370 = pneg %p281
      $region50: #{adm_attention_block.1} parent=11 // pred_check_branch
        %372 = sbr.rel (%p370) target = $region52
      $region51: #{adm_attention_block.1} parent=11 // pred_region
        _
      $region52: #{adm_attention_block.1} parent=11 // pred_fallthru
        _
      // Predicated region
      $region53: #{adm_attention_block.1} parent=11 // pred_check
        %p373 = pneg %p302
      $region54: #{adm_attention_block.1} parent=11 // pred_check_branch
        %375 = sbr.rel (%p373) target = $region56
      $region55: #{adm_attention_block.1} parent=11 // pred_region
        _
      $region56: #{adm_attention_block.1} parent=11 // pred_fallthru
        _
    $region12: #{adm_attention_block.1} parent=5 // pred_fallthru
      _
    %p376 = scmp.lt.s32.totalorder %s19, 2
    // Predicated region
    $region57: #{adm_attention_block.1} parent=5 // pred_check
      %p377 = pneg %p376
    $region58: #{adm_attention_block.1} parent=5 // pred_check_branch
      %379 = sbr.rel (%p377) target = $region60
    $region59: #{adm_attention_block.1} parent=5 // pred_region
      // Predicated region
      $region61: #{adm_attention_block.1} parent=59 // pred_check
        %p380 = pneg %p39
      $region62: #{adm_attention_block.1} parent=59 // pred_check_branch
        %382 = sbr.rel (%p380) target = $region64
      $region63: #{adm_attention_block.1} parent=59 // pred_region
        %p383 = scmp.lt.s32.totalorder %s19, 1
        %s384 = scalar_select %p383, %s19, 1
        %s385 = smul.addr %s384, 8
        %s386 = smul.addr %s385, 8
        %s387 = scalar_lea.vmem %s0, %s386
      $region64: #{adm_attention_block.1} parent=59 // pred_fallthru
        _
      // Predicated region
      $region65: #{adm_attention_block.1} parent=59 // pred_check
        %p388 = pneg %p65
      $region66: #{adm_attention_block.1} parent=59 // pred_check_branch
        %390 = sbr.rel (%p388) target = $region68
      $region67: #{adm_attention_block.1} parent=59 // pred_region
        %p391 = scmp.lt.s32.totalorder %s19, 1
        %s392 = scalar_select %p391, %s19, 1
        %s393 = smul.addr %s392, 8
        %s394 = scalar_lea.vmem %s1, %s393
      $region68: #{adm_attention_block.1} parent=59 // pred_fallthru
        _
    $region60: #{adm_attention_block.1} parent=5 // pred_fallthru
      _
    %p395 = scmp.le.s32.totalorder 1, %s19
    %p396 = scmp.lt.s32.totalorder %s19, 3
    %p397 = pnand %p395, %p396
    %p398 = pneg %p397
    // Predicated region
    $region69: #{adm_attention_block.1} parent=5 // pred_check
      _
    $region70: #{adm_attention_block.1} parent=5 // pred_check_branch
      %400 = sbr.rel (%p397) target = $region72
    $region71: #{adm_attention_block.1} parent=5 // pred_region
      %s401 = ssub.s32 %s19, 1
      %p402 = scmp.lt.s32.totalorder %s24, 1
      %s403 = scalar_select %p402, %s24, 1
      %s404 = smul.addr %s403, 8
      %s405 = smul.addr %s404, 8
      %s406 = scalar_lea.vmem %s0, %s405
      %p407 = pneg %p45
      %p408 = pneg %p42
      %p409 = scmp.lt.s32.totalorder %s24, 1
      %s410 = scalar_select %p409, %s24, 1
      %s411 = smul.addr %s410, 8
      %s412 = scalar_lea.vmem %s1, %s411
      %p413 = pneg %p71
      %p414 = pneg %p68
      %p415 = pneg %p92
      %p416 = pneg %p89
      %p417 = pneg %p113
      %p418 = pneg %p110
      %p419 = pneg %p134
      %p420 = pneg %p131
      %p421 = pneg %p155
      %p422 = pneg %p152
      %p423 = pneg %p176
      %p424 = pneg %p173
      %p425 = pneg %p197
      %p426 = pneg %p194
      %p427 = pneg %p218
      %p428 = pneg %p215
      %p429 = pneg %p239
      %p430 = pneg %p236
      %p431 = pneg %p260
      %p432 = pneg %p257
      %p433 = pneg %p281
      %p434 = pneg %p278
      %p435 = pneg %p302
      %p436 = pneg %p299
      %p437 = pneg %p328
      %p438 = pneg %p325
      %p439 = scmp.lt.s32.totalorder %s24, 1
      %s440 = scalar_select %p439, %s24, 1
      %s441 = smul.addr %s440, 8
      %s442 = smul.addr %s441, 8
      %s443 = scalar_lea.vmem %s13, %s442
      %p444 = scmp.lt.s32.totalorder %s24, 1
      %s445 = scalar_select %p444, %s24, 1
      %s446 = smul.addr %s445, 8
      %s447 = smul.addr %s446, 8
      %s448 = scalar_lea.vmem %s0, %s447
      %p449 = scmp.lt.s32.totalorder %s24, 1
      %s450 = scalar_select %p449, %s24, 1
      %s451 = smul.addr %s450, 8
      %s452 = scalar_lea.vmem %s1, %s451
      %p453 = scmp.lt.s32.totalorder %s24, 1
      %s454 = scalar_select %p453, %s24, 1
      %s455 = smul.addr %s454, 8
      %s456 = smul.addr %s455, 8
      %s457 = scalar_lea.vmem %s13, %s456
      %v458 = vld [vmem:[%s448] sm:$0xff]
      %v459 = vld [vmem:[%s448 + $0x8] sm:$0xff]
      %v460 = vld [vmem:[%s448 + $0x10] sm:$0xff]
      %v461 = vld [vmem:[%s448 + $0x18] sm:$0xff]
      %v462 = vld [vmem:[%s448 + $0x20] sm:$0xff]
      %v463 = vld [vmem:[%s448 + $0x28] sm:$0xff]
      %v464 = vld [vmem:[%s448 + $0x30] sm:$0xff]
      %v465 = vld [vmem:[%s448 + $0x38] sm:$0xff]
      %v466 = vld [vmem:[%s452] sm:$0xff]
      %v467 = vld [vmem:[%s2] sm:$0xff]
      %v468 = vld [vmem:[%s2 + $0x8] sm:$0xff]
      %v469 = vld [vmem:[%s2 + $0x10] sm:$0xff]
      %v470 = vld [vmem:[%s2 + $0x18] sm:$0xff]
      %v471 = vld [vmem:[%s2 + $0x20] sm:$0xff]
      %v472 = vld [vmem:[%s2 + $0x28] sm:$0xff]
      %v473 = vld [vmem:[%s2 + $0x30] sm:$0xff]
      %v474 = vld [vmem:[%s2 + $0x38] sm:$0xff]
      %v475 = vld [vmem:[%s3] sm:$0x1]
      %v476 = vld [vmem:[%s4] sm:$0x1]
      %v477 = vld [vmem:[%s5] sm:$0xff]
      %v478 = vld [vmem:[%s5 + $0x8] sm:$0xff]
      %v479 = vld [vmem:[%s5 + $0x10] sm:$0xff]
      %v480 = vld [vmem:[%s5 + $0x18] sm:$0xff]
      %v481 = vld [vmem:[%s5 + $0x20] sm:$0xff]
      %v482 = vld [vmem:[%s5 + $0x28] sm:$0xff]
      %v483 = vld [vmem:[%s5 + $0x30] sm:$0xff]
      %v484 = vld [vmem:[%s5 + $0x38] sm:$0xff]
      %v485 = vld [vmem:[%s6] sm:$0xff]
      %vm486 = vcmask 523264
      %v488 = vsel %vm486, %v467, 0
      %v491 = vsel %vm486, %v468, 0
      %v494 = vsel %vm486, %v469, 0
      %v497 = vsel %vm486, %v470, 0
      %v500 = vsel %vm486, %v471, 0
      %v503 = vsel %vm486, %v472, 0
      %v506 = vsel %vm486, %v473, 0
      %v509 = vsel %vm486, %v474, 0
      %v512 = vsel %vm486, %v458, 0
      %v515 = vsel %vm486, %v459, 0
      %v518 = vsel %vm486, %v460, 0
      %v521 = vsel %vm486, %v461, 0
      %v524 = vsel %vm486, %v462, 0
      %v527 = vsel %vm486, %v463, 0
      %v530 = vsel %vm486, %v464, 0
      %v533 = vsel %vm486, %v465, 0
      %535 = vmatpush.xpose.msra.mxu0 0.0
      %536 = vmatpush.xpose.msra.mxu0 0.0
      %537 = vmatpush.xpose.msra.mxu0 0.0
      %538 = vmatpush.xpose.msra.mxu0 0.0
      %539 = vmatpush.xpose.msra.mxu0 0.0
      %540 = vmatpush.xpose.msra.mxu0 0.0
      %541 = vmatpush.xpose.msra.mxu0 0.0
      %542 = vmatpush.xpose.msra.mxu0 0.0
      %543 = vmatpush.xpose.msra.mxu0 %v533
      %544 = vmatpush.xpose.msra.mxu0 %v530
      %545 = vmatpush.xpose.msra.mxu0 %v527
      %546 = vmatpush.xpose.msra.mxu0 %v524
      %547 = vmatpush.xpose.msra.mxu0 %v521
      %548 = vmatpush.xpose.msra.mxu0 %v518
      %549 = vmatpush.xpose.msra.mxu0 %v515
      %550 = vmatpush.xpose.msra.mxu0 %v512
      %551 = vmatmul.f32.gmra.mxu0 %v488
      %v552 = vpop.f32.mrf.mxu0
      %v553 = vadd.f32 0.0, %v552
      %554 = vmatmul.f32.gmra.mxu0 %v491
      %v555 = vpop.f32.mrf.mxu0
      %v556 = vadd.f32 0.0, %v555
      %557 = vmatmul.f32.gmra.mxu0 %v494
      %v558 = vpop.f32.mrf.mxu0
      %v559 = vadd.f32 0.0, %v558
      %560 = vmatmul.f32.gmra.mxu0 %v497
      %v561 = vpop.f32.mrf.mxu0
      %v562 = vadd.f32 0.0, %v561
      %563 = vmatmul.f32.gmra.mxu0 %v500
      %v564 = vpop.f32.mrf.mxu0
      %v565 = vadd.f32 0.0, %v564
      %566 = vmatmul.f32.gmra.mxu0 %v503
      %v567 = vpop.f32.mrf.mxu0
      %v568 = vadd.f32 0.0, %v567
      %569 = vmatmul.f32.gmra.mxu0 %v506
      %v570 = vpop.f32.mrf.mxu0
      %v571 = vadd.f32 0.0, %v570
      %572 = vmatmul.f32.gmra.mxu0 %v509
      %v573 = vpop.f32.mrf.mxu0
      %v574 = vadd.f32 0.0, %v573
      %575 = vdwg.mxu0
      %v576 = vsel %vm486, %v553, 0.0
      %v577 = vsel %vm486, %v556, 0.0
      %v578 = vadd.f32 %v576, %v577
      %v579 = vsel %vm486, %v559, 0.0
      %v580 = vadd.f32 %v578, %v579
      %v581 = vsel %vm486, %v562, 0.0
      %v582 = vadd.f32 %v580, %v581
      %v583 = vsel %vm486, %v565, 0.0
      %v584 = vadd.f32 %v582, %v583
      %v585 = vsel %vm486, %v568, 0.0
      %v586 = vadd.f32 %v584, %v585
      %v587 = vsel %vm486, %v571, 0.0
      %v588 = vadd.f32 %v586, %v587
      %v589 = vsel %vm486, %v574, 0.0
      %v590 = vadd.f32 %v588, %v589
      %v591 = vrot.slane %v590, 4
      %v592 = vadd.f32 %v590, %v591
      %v593 = vrot.slane %v592, 2
      %v594 = vadd.f32 %v592, %v593
      %v595 = vrot.slane %v594, 1
      %v596 = vadd.f32 %v594, %v595
      %v597 = vmul.f32 %v553, %v553
      %v598 = vmul.f32 %v556, %v556
      %v599 = vmul.f32 %v559, %v559
      %v600 = vmul.f32 %v562, %v562
      %v601 = vmul.f32 %v565, %v565
      %v602 = vmul.f32 %v568, %v568
      %v603 = vmul.f32 %v571, %v571
      %v604 = vmul.f32 %v574, %v574
      %v605 = vsel %vm486, %v597, 0.0
      %v606 = vsel %vm486, %v598, 0.0
      %v607 = vadd.f32 %v605, %v606
      %v608 = vsel %vm486, %v599, 0.0
      %v609 = vadd.f32 %v607, %v608
      %v610 = vsel %vm486, %v600, 0.0
      %v611 = vadd.f32 %v609, %v610
      %v612 = vsel %vm486, %v601, 0.0
      %v613 = vadd.f32 %v611, %v612
      %v614 = vsel %vm486, %v602, 0.0
      %v615 = vadd.f32 %v613, %v614
      %v616 = vsel %vm486, %v603, 0.0
      %v617 = vadd.f32 %v615, %v616
      %v618 = vsel %vm486, %v604, 0.0
      %v619 = vadd.f32 %v617, %v618
      %v620 = vrot.slane %v619, 4
      %v621 = vadd.f32 %v619, %v620
      %v622 = vrot.slane %v621, 2
      %v623 = vadd.f32 %v621, %v622
      %v624 = vrot.slane %v623, 1
      %v625 = vadd.f32 %v623, %v624
      %vm626 = vcmask 1040384
      %v627 = vsel %vm626, %v596, %v625
      %v629 = vsel %vm486, %v627, 0
      %631 = vmatpush.msra.mxu0 0.0
      %632 = vmatpush.msra.mxu0 0.0
      %633 = vmatpush.msra.mxu0 0.0
      %634 = vmatpush.msra.mxu0 0.0
      %635 = vmatpush.msra.mxu0 0.0
      %636 = vmatpush.msra.mxu0 0.0
      %637 = vmatpush.msra.mxu0 0.0
      %638 = vmatpush.msra.mxu0 0.0
      %639 = vmatpush.msra.mxu0 %v484
      %640 = vmatpush.msra.mxu0 %v483
      %641 = vmatpush.msra.mxu0 %v482
      %642 = vmatpush.msra.mxu0 %v481
      %643 = vmatpush.msra.mxu0 %v480
      %644 = vmatpush.msra.mxu0 %v479
      %645 = vmatpush.msra.mxu0 %v478
      %646 = vmatpush.msra.mxu0 %v477
      %647 = vmatmul.f32.gmra.mxu0 %v629
      %v648 = vpop.f32.mrf.mxu0
      %v649 = vadd.f32 0.0, %v648
      %650 = vdwg.mxu0
      %v651 = vmul.f32 %v649, 0.001953125
      %vm652 = vcmask 64512
      %v654 = vsel %vm652, %v651, 0
      %656 = vmatpush.msra.mxu0 0.0
      %657 = vmatpush.msra.mxu0 0.0
      %658 = vmatpush.msra.mxu0 0.0
      %659 = vmatpush.msra.mxu0 0.0
      %660 = vmatpush.msra.mxu0 0.0
      %661 = vmatpush.msra.mxu0 0.0
      %662 = vmatpush.msra.mxu0 0.0
      %663 = vmatpush.msra.mxu0 0.0
      %664 = vmatpush.msra.mxu0 0.0
      %665 = vmatpush.msra.mxu0 0.0
      %666 = vmatpush.msra.mxu0 0.0
      %667 = vmatpush.msra.mxu0 0.0
      %668 = vmatpush.msra.mxu0 0.0
      %669 = vmatpush.msra.mxu0 0.0
      %670 = vmatpush.msra.mxu0 0.0
      %671 = vmatpush.msra.mxu0 %v485
      %672 = vmatmul.f32.gmra.mxu0 %v654
      %v673 = vpop.f32.mrf.mxu0
      %v674 = vadd.f32 0.0, %v673
      %675 = vdwg.mxu0
      %v676 = vmul.f32 %v674, %v674
      %v678 = vrot.slane %v676, 7
      %v680 = vsub.f32 %v674, %v678
      %v681 = vperm.slane %v674, 0
      %v682 = vsub.f32 %v553, %v681
      %v683 = vsub.f32 %v556, %v681
      %v684 = vsub.f32 %v559, %v681
      %v685 = vsub.f32 %v562, %v681
      %v686 = vsub.f32 %v565, %v681
      %v687 = vsub.f32 %v568, %v681
      %v688 = vsub.f32 %v571, %v681
      %v689 = vsub.f32 %v574, %v681
      %v690 = vadd.f32 %v680, 1e-05
      %v691 = vrsqrt.pop %v690
      %v692 = vmul.f32 %v691, %v690
      %v693 = vmul.f32 %v692, %v691
      %v694 = vmul.f32 0.5, %v693
      %v695 = vsub.f32 1.5, %v694
      %v696 = vmul.f32 %v691, %v695
      %vm697 = vweird.f32 %v690
      %vm698 = vweird.f32 %v691
      %vm699 = vmor %vm697, %vm698
      %v700 = vsel %vm699, %v691, %v696
      %v701 = vperm.slane %v700, 1
      %v702 = vmul.f32 %v682, %v701
      %v703 = vmul.f32 %v683, %v701
      %v704 = vmul.f32 %v684, %v701
      %v705 = vmul.f32 %v685, %v701
      %v706 = vmul.f32 %v686, %v701
      %v707 = vmul.f32 %v687, %v701
      %v708 = vmul.f32 %v688, %v701
      %v709 = vmul.f32 %v689, %v701
      %v711 = vperm.slane %v475, 0
      %v713 = vmul.f32 %v702, %v711
      %v714 = vmul.f32 %v703, %v711
      %v715 = vmul.f32 %v704, %v711
      %v716 = vmul.f32 %v705, %v711
      %v717 = vmul.f32 %v706, %v711
      %v718 = vmul.f32 %v707, %v711
      %v719 = vmul.f32 %v708, %v711
      %v720 = vmul.f32 %v709, %v711
      %v722 = vperm.slane %v476, 0
      %v724 = vadd.f32 %v713, %v722
      %v725 = vadd.f32 %v714, %v722
      %v726 = vadd.f32 %v715, %v722
      %v727 = vadd.f32 %v716, %v722
      %v728 = vadd.f32 %v717, %v722
      %v729 = vadd.f32 %v718, %v722
      %v730 = vadd.f32 %v719, %v722
      %v731 = vadd.f32 %v720, %v722
      %v732 = vld [vmem:[%s7] sm:$0xff]
      %v733 = vld [vmem:[%s7 + $0x8] sm:$0xff]
      %v734 = vld [vmem:[%s7 + $0x10] sm:$0xff]
      %v735 = vld [vmem:[%s7 + $0x18] sm:$0xff]
      %v736 = vld [vmem:[%s7 + $0x20] sm:$0xff]
      %v737 = vld [vmem:[%s7 + $0x28] sm:$0xff]
      %v738 = vld [vmem:[%s7 + $0x30] sm:$0xff]
      %v739 = vld [vmem:[%s7 + $0x38] sm:$0xff]
      %v740 = vld [vmem:[%s7 + $0x40] sm:$0xff]
      %v741 = vld [vmem:[%s7 + $0x48] sm:$0xff]
      %v742 = vld [vmem:[%s7 + $0x50] sm:$0xff]
      %v743 = vld [vmem:[%s7 + $0x58] sm:$0xff]
      %v744 = vld [vmem:[%s7 + $0x60] sm:$0xff]
      %v745 = vld [vmem:[%s7 + $0x68] sm:$0xff]
      %v746 = vld [vmem:[%s7 + $0x70] sm:$0xff]
      %v747 = vld [vmem:[%s7 + $0x78] sm:$0xff]
      %v748 = vld [vmem:[%s8] sm:$0x3]
      %v750 = vperm.slane %v748, 0
      %v751 = vperm.slane %v748, 1
      %v755 = vsel %vm486, %v724, 0
      %v758 = vsel %vm486, %v725, 0
      %v761 = vsel %vm486, %v726, 0
      %v764 = vsel %vm486, %v727, 0
      %v767 = vsel %vm486, %v728, 0
      %v770 = vsel %vm486, %v729, 0
      %v773 = vsel %vm486, %v730, 0
      %v776 = vsel %vm486, %v731, 0
      %778 = vmatpush.msra.mxu0 0.0
      %779 = vmatpush.msra.mxu0 0.0
      %780 = vmatpush.msra.mxu0 0.0
      %781 = vmatpush.msra.mxu0 0.0
      %782 = vmatpush.msra.mxu0 0.0
      %783 = vmatpush.msra.mxu0 0.0
      %784 = vmatpush.msra.mxu0 0.0
      %785 = vmatpush.msra.mxu0 0.0
      %786 = vmatpush.msra.mxu0 %v746
      %787 = vmatpush.msra.mxu0 %v744
      %788 = vmatpush.msra.mxu0 %v742
      %789 = vmatpush.msra.mxu0 %v740
      %790 = vmatpush.msra.mxu0 %v738
      %791 = vmatpush.msra.mxu0 %v736
      %792 = vmatpush.msra.mxu0 %v734
      %793 = vmatpush.msra.mxu0 %v732
      %794 = vmatmul.f32.gmra.mxu0 %v755
      %v795 = vpop.f32.mrf.mxu0
      %v796 = vadd.f32 %v750, %v795
      %797 = vmatmul.f32.gmra.mxu0 %v758
      %v798 = vpop.f32.mrf.mxu0
      %v799 = vadd.f32 %v750, %v798
      %800 = vmatmul.f32.gmra.mxu0 %v761
      %v801 = vpop.f32.mrf.mxu0
      %v802 = vadd.f32 %v750, %v801
      %803 = vmatmul.f32.gmra.mxu0 %v764
      %v804 = vpop.f32.mrf.mxu0
      %v805 = vadd.f32 %v750, %v804
      %806 = vmatmul.f32.gmra.mxu0 %v767
      %v807 = vpop.f32.mrf.mxu0
      %v808 = vadd.f32 %v750, %v807
      %809 = vmatmul.f32.gmra.mxu0 %v770
      %v810 = vpop.f32.mrf.mxu0
      %v811 = vadd.f32 %v750, %v810
      %812 = vmatmul.f32.gmra.mxu0 %v773
      %v813 = vpop.f32.mrf.mxu0
      %v814 = vadd.f32 %v750, %v813
      %815 = vmatmul.f32.gmra.mxu0 %v776
      %v816 = vpop.f32.mrf.mxu0
      %v817 = vadd.f32 %v750, %v816
      %818 = vdwg.mxu0
      %819 = vmatpush.msra.mxu0 0.0
      %820 = vmatpush.msra.mxu0 0.0
      %821 = vmatpush.msra.mxu0 0.0
      %822 = vmatpush.msra.mxu0 0.0
      %823 = vmatpush.msra.mxu0 0.0
      %824 = vmatpush.msra.mxu0 0.0
      %825 = vmatpush.msra.mxu0 0.0
      %826 = vmatpush.msra.mxu0 0.0
      %827 = vmatpush.msra.mxu0 %v747
      %828 = vmatpush.msra.mxu0 %v745
      %829 = vmatpush.msra.mxu0 %v743
      %830 = vmatpush.msra.mxu0 %v741
      %831 = vmatpush.msra.mxu0 %v739
      %832 = vmatpush.msra.mxu0 %v737
      %833 = vmatpush.msra.mxu0 %v735
      %834 = vmatpush.msra.mxu0 %v733
      %835 = vmatmul.f32.gmra.mxu0 %v755
      %v836 = vpop.f32.mrf.mxu0
      %v837 = vadd.f32 %v751, %v836
      %838 = vmatmul.f32.gmra.mxu0 %v758
      %v839 = vpop.f32.mrf.mxu0
      %v840 = vadd.f32 %v751, %v839
      %841 = vmatmul.f32.gmra.mxu0 %v761
      %v842 = vpop.f32.mrf.mxu0
      %v843 = vadd.f32 %v751, %v842
      %844 = vmatmul.f32.gmra.mxu0 %v764
      %v845 = vpop.f32.mrf.mxu0
      %v846 = vadd.f32 %v751, %v845
      %847 = vmatmul.f32.gmra.mxu0 %v767
      %v848 = vpop.f32.mrf.mxu0
      %v849 = vadd.f32 %v751, %v848
      %850 = vmatmul.f32.gmra.mxu0 %v770
      %v851 = vpop.f32.mrf.mxu0
      %v852 = vadd.f32 %v751, %v851
      %853 = vmatmul.f32.gmra.mxu0 %v773
      %v854 = vpop.f32.mrf.mxu0
      %v855 = vadd.f32 %v751, %v854
      %856 = vmatmul.f32.gmra.mxu0 %v776
      %v857 = vpop.f32.mrf.mxu0
      %v858 = vadd.f32 %v751, %v857
      %859 = vdwg.mxu0
      %v860 = vld [vmem:[%s9] sm:$0xff]
      %v861 = vld [vmem:[%s9 + $0x8] sm:$0xff]
      %v862 = vld [vmem:[%s9 + $0x10] sm:$0xff]
      %v863 = vld [vmem:[%s9 + $0x18] sm:$0xff]
      %v864 = vld [vmem:[%s10] sm:$0x1]
      %v866 = vperm.slane %v864, 0
      %vm868 = vcmask 261120
      %v870 = vsel %vm868, %v466, 0
      %872 = vmatpush.msra.mxu0 0.0
      %873 = vmatpush.msra.mxu0 0.0
      %874 = vmatpush.msra.mxu0 0.0
      %875 = vmatpush.msra.mxu0 0.0
      %876 = vmatpush.msra.mxu0 0.0
      %877 = vmatpush.msra.mxu0 0.0
      %878 = vmatpush.msra.mxu0 0.0
      %879 = vmatpush.msra.mxu0 0.0
      %880 = vmatpush.msra.mxu0 0.0
      %881 = vmatpush.msra.mxu0 0.0
      %882 = vmatpush.msra.mxu0 0.0
      %883 = vmatpush.msra.mxu0 0.0
      %884 = vmatpush.msra.mxu0 %v863
      %885 = vmatpush.msra.mxu0 %v862
      %886 = vmatpush.msra.mxu0 %v861
      %887 = vmatpush.msra.mxu0 %v860
      %888 = vmatmul.f32.gmra.mxu0 %v870
      %v889 = vpop.f32.mrf.mxu0
      %v890 = vadd.f32 %v866, %v889
      %891 = vdwg.mxu0
      %v892 = vld [vmem:[%s11] sm:$0xff]
      %v893 = vld [vmem:[%s11 + $0x8] sm:$0xff]
      %v894 = vld [vmem:[%s11 + $0x10] sm:$0xff]
      %v895 = vld [vmem:[%s11 + $0x18] sm:$0xff]
      %v896 = vld [vmem:[%s11 + $0x20] sm:$0xff]
      %v897 = vld [vmem:[%s11 + $0x28] sm:$0xff]
      %v898 = vld [vmem:[%s11 + $0x30] sm:$0xff]
      %v899 = vld [vmem:[%s11 + $0x38] sm:$0xff]
      %v900 = vmul.f32 %v796, 0.17677669
      %v901 = vmul.f32 %v799, 0.17677669
      %v902 = vmul.f32 %v802, 0.17677669
      %v903 = vmul.f32 %v805, 0.17677669
      %v904 = vmul.f32 %v808, 0.17677669
      %v905 = vmul.f32 %v811, 0.17677669
      %v906 = vmul.f32 %v814, 0.17677669
      %v907 = vmul.f32 %v817, 0.17677669
      %v909 = vsel %vm868, %v900, 0
      %v912 = vsel %vm868, %v901, 0
      %v915 = vsel %vm868, %v902, 0
      %v918 = vsel %vm868, %v903, 0
      %v921 = vsel %vm868, %v904, 0
      %v924 = vsel %vm868, %v905, 0
      %v927 = vsel %vm868, %v906, 0
      %v930 = vsel %vm868, %v907, 0
      %v933 = vsel %vm868, %v890, 0
      %935 = vmatpush.xpose.msra.mxu0 0.0
      %936 = vmatpush.xpose.msra.mxu0 0.0
      %937 = vmatpush.xpose.msra.mxu0 0.0
      %938 = vmatpush.xpose.msra.mxu0 0.0
      %939 = vmatpush.xpose.msra.mxu0 0.0
      %940 = vmatpush.xpose.msra.mxu0 0.0
      %941 = vmatpush.xpose.msra.mxu0 0.0
      %942 = vmatpush.xpose.msra.mxu0 0.0
      %943 = vmatpush.xpose.msra.mxu0 0.0
      %944 = vmatpush.xpose.msra.mxu0 0.0
      %945 = vmatpush.xpose.msra.mxu0 0.0
      %946 = vmatpush.xpose.msra.mxu0 0.0
      %947 = vmatpush.xpose.msra.mxu0 0.0
      %948 = vmatpush.xpose.msra.mxu0 0.0
      %949 = vmatpush.xpose.msra.mxu0 0.0
      %950 = vmatpush.xpose.msra.mxu0 %v933
      %951 = vmatmul.f32.gmra.mxu0 %v909
      %v952 = vpop.f32.mrf.mxu0
      %v953 = vadd.f32 0.0, %v952
      %954 = vmatmul.f32.gmra.mxu0 %v912
      %v955 = vpop.f32.mrf.mxu0
      %v956 = vadd.f32 0.0, %v955
      %957 = vmatmul.f32.gmra.mxu0 %v915
      %v958 = vpop.f32.mrf.mxu0
      %v959 = vadd.f32 0.0, %v958
      %960 = vmatmul.f32.gmra.mxu0 %v918
      %v961 = vpop.f32.mrf.mxu0
      %v962 = vadd.f32 0.0, %v961
      %963 = vmatmul.f32.gmra.mxu0 %v921
      %v964 = vpop.f32.mrf.mxu0
      %v965 = vadd.f32 0.0, %v964
      %966 = vmatmul.f32.gmra.mxu0 %v924
      %v967 = vpop.f32.mrf.mxu0
      %v968 = vadd.f32 0.0, %v967
      %969 = vmatmul.f32.gmra.mxu0 %v927
      %v970 = vpop.f32.mrf.mxu0
      %v971 = vadd.f32 0.0, %v970
      %972 = vmatmul.f32.gmra.mxu0 %v930
      %v973 = vpop.f32.mrf.mxu0
      %v974 = vadd.f32 0.0, %v973
      %975 = vdwg.mxu0
      %984 = vrot.lane.b32.xlu0 %v796, 64
      %v985 = vpop.permute.xlu0 %984
      %986 = vrot.lane.b32.xlu0 %v799, 64
      %v987 = vpop.permute.xlu0 %986
      %988 = vrot.lane.b32.xlu0 %v802, 64
      %v989 = vpop.permute.xlu0 %988
      %990 = vrot.lane.b32.xlu0 %v805, 64
      %v991 = vpop.permute.xlu0 %990
      %992 = vrot.lane.b32.xlu0 %v808, 64
      %v993 = vpop.permute.xlu0 %992
      %994 = vrot.lane.b32.xlu0 %v811, 64
      %v995 = vpop.permute.xlu0 %994
      %996 = vrot.lane.b32.xlu0 %v814, 64
      %v997 = vpop.permute.xlu0 %996
      %998 = vrot.lane.b32.xlu0 %v817, 64
      %v999 = vpop.permute.xlu0 %998
      %v1000 = vsel %vm868, %v985, 0
      %v1002 = vsel %vm868, %v987, 0
      %v1004 = vsel %vm868, %v989, 0
      %v1006 = vsel %vm868, %v991, 0
      %v1008 = vsel %vm868, %v993, 0
      %v1010 = vsel %vm868, %v995, 0
      %v1012 = vsel %vm868, %v997, 0
      %v1014 = vsel %vm868, %v999, 0
      %1016 = vmatpush.xpose.msra.mxu0 0.0
      %1017 = vmatpush.xpose.msra.mxu0 0.0
      %1018 = vmatpush.xpose.msra.mxu0 0.0
      %1019 = vmatpush.xpose.msra.mxu0 0.0
      %1020 = vmatpush.xpose.msra.mxu0 0.0
      %1021 = vmatpush.xpose.msra.mxu0 0.0
      %1022 = vmatpush.xpose.msra.mxu0 0.0
      %1023 = vmatpush.xpose.msra.mxu0 0.0
      %1024 = vmatpush.xpose.msra.mxu0 %v1014
      %1025 = vmatpush.xpose.msra.mxu0 %v1012
      %1026 = vmatpush.xpose.msra.mxu0 %v1010
      %1027 = vmatpush.xpose.msra.mxu0 %v1008
      %1028 = vmatpush.xpose.msra.mxu0 %v1006
      %1029 = vmatpush.xpose.msra.mxu0 %v1004
      %1030 = vmatpush.xpose.msra.mxu0 %v1002
      %1031 = vmatpush.xpose.msra.mxu0 %v1000
      %1032 = vmatmul.f32.gmra.mxu0 %v909
      %v1033 = vpop.f32.mrf.mxu0
      %v1034 = vadd.f32 0.0, %v1033
      %1035 = vmatmul.f32.gmra.mxu0 %v912
      %v1036 = vpop.f32.mrf.mxu0
      %v1037 = vadd.f32 0.0, %v1036
      %1038 = vmatmul.f32.gmra.mxu0 %v915
      %v1039 = vpop.f32.mrf.mxu0
      %v1040 = vadd.f32 0.0, %v1039
      %1041 = vmatmul.f32.gmra.mxu0 %v918
      %v1042 = vpop.f32.mrf.mxu0
      %v1043 = vadd.f32 0.0, %v1042
      %1044 = vmatmul.f32.gmra.mxu0 %v921
      %v1045 = vpop.f32.mrf.mxu0
      %v1046 = vadd.f32 0.0, %v1045
      %1047 = vmatmul.f32.gmra.mxu0 %v924
      %v1048 = vpop.f32.mrf.mxu0
      %v1049 = vadd.f32 0.0, %v1048
      %1050 = vmatmul.f32.gmra.mxu0 %v927
      %v1051 = vpop.f32.mrf.mxu0
      %v1052 = vadd.f32 0.0, %v1051
      %1053 = vmatmul.f32.gmra.mxu0 %v930
      %v1054 = vpop.f32.mrf.mxu0
      %v1055 = vadd.f32 0.0, %v1054
      %1056 = vdwg.mxu0
      %v1057 = vsel %vm652, %v953, -inf
      %1058 = vmax.xlane.f32.xlu0 %v1057
      %v1059 = vpop.xlane.xlu0 %1058
      %v1060 = vsel %vm652, %v956, -inf
      %1061 = vmax.xlane.f32.xlu0 %v1060
      %v1062 = vpop.xlane.xlu0 %1061
      %v1063 = vsel %vm652, %v959, -inf
      %1064 = vmax.xlane.f32.xlu0 %v1063
      %v1065 = vpop.xlane.xlu0 %1064
      %v1066 = vsel %vm652, %v962, -inf
      %1067 = vmax.xlane.f32.xlu0 %v1066
      %v1068 = vpop.xlane.xlu0 %1067
      %v1069 = vsel %vm652, %v965, -inf
      %1070 = vmax.xlane.f32.xlu0 %v1069
      %v1071 = vpop.xlane.xlu0 %1070
      %v1072 = vsel %vm652, %v968, -inf
      %1073 = vmax.xlane.f32.xlu0 %v1072
      %v1074 = vpop.xlane.xlu0 %1073
      %v1075 = vsel %vm652, %v971, -inf
      %1076 = vmax.xlane.f32.xlu0 %v1075
      %v1077 = vpop.xlane.xlu0 %1076
      %v1078 = vsel %vm652, %v974, -inf
      %1079 = vmax.xlane.f32.xlu0 %v1078
      %v1080 = vpop.xlane.xlu0 %1079
      %v1081 = vsel %vm486, %v1034, -inf
      %1082 = vmax.xlane.f32.xlu0 %v1081
      %v1083 = vpop.xlane.xlu0 %1082
      %v1084 = vsel %vm486, %v1037, -inf
      %1085 = vmax.xlane.f32.xlu0 %v1084
      %v1086 = vpop.xlane.xlu0 %1085
      %v1087 = vsel %vm486, %v1040, -inf
      %1088 = vmax.xlane.f32.xlu0 %v1087
      %v1089 = vpop.xlane.xlu0 %1088
      %v1090 = vsel %vm486, %v1043, -inf
      %1091 = vmax.xlane.f32.xlu0 %v1090
      %v1092 = vpop.xlane.xlu0 %1091
      %v1093 = vsel %vm486, %v1046, -inf
      %1094 = vmax.xlane.f32.xlu0 %v1093
      %v1095 = vpop.xlane.xlu0 %1094
      %v1096 = vsel %vm486, %v1049, -inf
      %1097 = vmax.xlane.f32.xlu0 %v1096
      %v1098 = vpop.xlane.xlu0 %1097
      %v1099 = vsel %vm486, %v1052, -inf
      %1100 = vmax.xlane.f32.xlu0 %v1099
      %v1101 = vpop.xlane.xlu0 %1100
      %v1102 = vsel %vm486, %v1055, -inf
      %1103 = vmax.xlane.f32.xlu0 %v1102
      %v1104 = vpop.xlane.xlu0 %1103
      %v1105 = vmax.f32 %v1059, %v1083
      %v1106 = vmax.f32 %v1062, %v1086
      %v1107 = vmax.f32 %v1065, %v1089
      %v1108 = vmax.f32 %v1068, %v1092
      %v1109 = vmax.f32 %v1071, %v1095
      %v1110 = vmax.f32 %v1074, %v1098
      %v1111 = vmax.f32 %v1077, %v1101
      %v1112 = vmax.f32 %v1080, %v1104
      %v1113 = vsub.f32 %v953, %v1105
      %v1114 = vsub.f32 %v956, %v1106
      %v1115 = vsub.f32 %v959, %v1107
      %v1116 = vsub.f32 %v962, %v1108
      %v1117 = vsub.f32 %v965, %v1109
      %v1118 = vsub.f32 %v968, %v1110
      %v1119 = vsub.f32 %v971, %v1111
      %v1120 = vsub.f32 %v974, %v1112
      %v1121 = vmul.f32 %v1113, 1.442695
      %v1122 = vpow.pop %v1121
      %v1123 = vmul.f32 %v1114, 1.442695
      %v1124 = vpow.pop %v1123
      %v1125 = vmul.f32 %v1115, 1.442695
      %v1126 = vpow.pop %v1125
      %v1127 = vmul.f32 %v1116, 1.442695
      %v1128 = vpow.pop %v1127
      %v1129 = vmul.f32 %v1117, 1.442695
      %v1130 = vpow.pop %v1129
      %v1131 = vmul.f32 %v1118, 1.442695
      %v1132 = vpow.pop %v1131
      %v1133 = vmul.f32 %v1119, 1.442695
      %v1134 = vpow.pop %v1133
      %v1135 = vmul.f32 %v1120, 1.442695
      %v1136 = vpow.pop %v1135
      %v1137 = vsub.f32 %v1034, %v1105
      %v1138 = vsub.f32 %v1037, %v1106
      %v1139 = vsub.f32 %v1040, %v1107
      %v1140 = vsub.f32 %v1043, %v1108
      %v1141 = vsub.f32 %v1046, %v1109
      %v1142 = vsub.f32 %v1049, %v1110
      %v1143 = vsub.f32 %v1052, %v1111
      %v1144 = vsub.f32 %v1055, %v1112
      %v1145 = vmul.f32 %v1137, 1.442695
      %v1146 = vpow.pop %v1145
      %v1147 = vmul.f32 %v1138, 1.442695
      %v1148 = vpow.pop %v1147
      %v1149 = vmul.f32 %v1139, 1.442695
      %v1150 = vpow.pop %v1149
      %v1151 = vmul.f32 %v1140, 1.442695
      %v1152 = vpow.pop %v1151
      %v1153 = vmul.f32 %v1141, 1.442695
      %v1154 = vpow.pop %v1153
      %v1155 = vmul.f32 %v1142, 1.442695
      %v1156 = vpow.pop %v1155
      %v1157 = vmul.f32 %v1143, 1.442695
      %v1158 = vpow.pop %v1157
      %v1159 = vmul.f32 %v1144, 1.442695
      %v1160 = vpow.pop %v1159
      %v1161 = vsel %vm652, %v1122, 0.0
      %1162 = vadd.xlane.f32.xlu0 %v1161
      %v1163 = vpop.xlane.xlu0 %1162
      %v1164 = vsel %vm652, %v1124, 0.0
      %1165 = vadd.xlane.f32.xlu0 %v1164
      %v1166 = vpop.xlane.xlu0 %1165
      %v1167 = vsel %vm652, %v1126, 0.0
      %1168 = vadd.xlane.f32.xlu0 %v1167
      %v1169 = vpop.xlane.xlu0 %1168
      %v1170 = vsel %vm652, %v1128, 0.0
      %1171 = vadd.xlane.f32.xlu0 %v1170
      %v1172 = vpop.xlane.xlu0 %1171
      %v1173 = vsel %vm652, %v1130, 0.0
      %1174 = vadd.xlane.f32.xlu0 %v1173
      %v1175 = vpop.xlane.xlu0 %1174
      %v1176 = vsel %vm652, %v1132, 0.0
      %1177 = vadd.xlane.f32.xlu0 %v1176
      %v1178 = vpop.xlane.xlu0 %1177
      %v1179 = vsel %vm652, %v1134, 0.0
      %1180 = vadd.xlane.f32.xlu0 %v1179
      %v1181 = vpop.xlane.xlu0 %1180
      %v1182 = vsel %vm652, %v1136, 0.0
      %1183 = vadd.xlane.f32.xlu0 %v1182
      %v1184 = vpop.xlane.xlu0 %1183
      %v1185 = vsel %vm486, %v1146, 0.0
      %1186 = vadd.xlane.f32.xlu0 %v1185
      %v1187 = vpop.xlane.xlu0 %1186
      %v1188 = vsel %vm486, %v1148, 0.0
      %1189 = vadd.xlane.f32.xlu0 %v1188
      %v1190 = vpop.xlane.xlu0 %1189
      %v1191 = vsel %vm486, %v1150, 0.0
      %1192 = vadd.xlane.f32.xlu0 %v1191
      %v1193 = vpop.xlane.xlu0 %1192
      %v1194 = vsel %vm486, %v1152, 0.0
      %1195 = vadd.xlane.f32.xlu0 %v1194
      %v1196 = vpop.xlane.xlu0 %1195
      %v1197 = vsel %vm486, %v1154, 0.0
      %1198 = vadd.xlane.f32.xlu0 %v1197
      %v1199 = vpop.xlane.xlu0 %1198
      %v1200 = vsel %vm486, %v1156, 0.0
      %1201 = vadd.xlane.f32.xlu0 %v1200
      %v1202 = vpop.xlane.xlu0 %1201
      %v1203 = vsel %vm486, %v1158, 0.0
      %1204 = vadd.xlane.f32.xlu0 %v1203
      %v1205 = vpop.xlane.xlu0 %1204
      %v1206 = vsel %vm486, %v1160, 0.0
      %1207 = vadd.xlane.f32.xlu0 %v1206
      %v1208 = vpop.xlane.xlu0 %1207
      %v1209 = vadd.f32 %v1163, %v1187
      %v1210 = vadd.f32 %v1166, %v1190
      %v1211 = vadd.f32 %v1169, %v1193
      %v1212 = vadd.f32 %v1172, %v1196
      %v1213 = vadd.f32 %v1175, %v1199
      %v1214 = vadd.f32 %v1178, %v1202
      %v1215 = vadd.f32 %v1181, %v1205
      %v1216 = vadd.f32 %v1184, %v1208
      %v1217 = vrcp.pop %v1209
      %v1218 = vrcp.pop %v1210
      %v1219 = vrcp.pop %v1211
      %v1220 = vrcp.pop %v1212
      %v1221 = vrcp.pop %v1213
      %v1222 = vrcp.pop %v1214
      %v1223 = vrcp.pop %v1215
      %v1224 = vrcp.pop %v1216
      %v1226 = vsel %vm486, %v1146, 0
      %v1229 = vsel %vm486, %v1148, 0
      %v1232 = vsel %vm486, %v1150, 0
      %v1235 = vsel %vm486, %v1152, 0
      %v1238 = vsel %vm486, %v1154, 0
      %v1241 = vsel %vm486, %v1156, 0
      %v1244 = vsel %vm486, %v1158, 0
      %v1247 = vsel %vm486, %v1160, 0
      %1249 = vmatpush.msra.mxu0 0.0
      %1250 = vmatpush.msra.mxu0 0.0
      %1251 = vmatpush.msra.mxu0 0.0
      %1252 = vmatpush.msra.mxu0 0.0
      %1253 = vmatpush.msra.mxu0 0.0
      %1254 = vmatpush.msra.mxu0 0.0
      %1255 = vmatpush.msra.mxu0 0.0
      %1256 = vmatpush.msra.mxu0 0.0
      %1257 = vmatpush.msra.mxu0 %v858
      %1258 = vmatpush.msra.mxu0 %v855
      %1259 = vmatpush.msra.mxu0 %v852
      %1260 = vmatpush.msra.mxu0 %v849
      %1261 = vmatpush.msra.mxu0 %v846
      %1262 = vmatpush.msra.mxu0 %v843
      %1263 = vmatpush.msra.mxu0 %v840
      %1264 = vmatpush.msra.mxu0 %v837
      %1265 = vmatmul.f32.gmra.mxu0 %v1226
      %v1266 = vpop.f32.mrf.mxu0
      %v1267 = vadd.f32 0.0, %v1266
      %1268 = vmatmul.f32.gmra.mxu0 %v1229
      %v1269 = vpop.f32.mrf.mxu0
      %v1270 = vadd.f32 0.0, %v1269
      %1271 = vmatmul.f32.gmra.mxu0 %v1232
      %v1272 = vpop.f32.mrf.mxu0
      %v1273 = vadd.f32 0.0, %v1272
      %1274 = vmatmul.f32.gmra.mxu0 %v1235
      %v1275 = vpop.f32.mrf.mxu0
      %v1276 = vadd.f32 0.0, %v1275
      %1277 = vmatmul.f32.gmra.mxu0 %v1238
      %v1278 = vpop.f32.mrf.mxu0
      %v1279 = vadd.f32 0.0, %v1278
      %1280 = vmatmul.f32.gmra.mxu0 %v1241
      %v1281 = vpop.f32.mrf.mxu0
      %v1282 = vadd.f32 0.0, %v1281
      %1283 = vmatmul.f32.gmra.mxu0 %v1244
      %v1284 = vpop.f32.mrf.mxu0
      %v1285 = vadd.f32 0.0, %v1284
      %1286 = vmatmul.f32.gmra.mxu0 %v1247
      %v1287 = vpop.f32.mrf.mxu0
      %v1288 = vadd.f32 0.0, %v1287
      %1289 = vdwg.mxu0
      %1290 = vrot.lane.b32.xlu0 %v890, 96
      %v1291 = vpop.permute.xlu0 %1290
      %v1294 = vsel %vm652, %v1122, 0
      %v1297 = vsel %vm652, %v1124, 0
      %v1300 = vsel %vm652, %v1126, 0
      %v1303 = vsel %vm652, %v1128, 0
      %v1306 = vsel %vm652, %v1130, 0
      %v1309 = vsel %vm652, %v1132, 0
      %v1312 = vsel %vm652, %v1134, 0
      %v1315 = vsel %vm652, %v1136, 0
      %1317 = vmatpush.msra.mxu0 0.0
      %1318 = vmatpush.msra.mxu0 0.0
      %1319 = vmatpush.msra.mxu0 0.0
      %1320 = vmatpush.msra.mxu0 0.0
      %1321 = vmatpush.msra.mxu0 0.0
      %1322 = vmatpush.msra.mxu0 0.0
      %1323 = vmatpush.msra.mxu0 0.0
      %1324 = vmatpush.msra.mxu0 0.0
      %1325 = vmatpush.msra.mxu0 0.0
      %1326 = vmatpush.msra.mxu0 0.0
      %1327 = vmatpush.msra.mxu0 0.0
      %1328 = vmatpush.msra.mxu0 0.0
      %1329 = vmatpush.msra.mxu0 0.0
      %1330 = vmatpush.msra.mxu0 0.0
      %1331 = vmatpush.msra.mxu0 0.0
      %1332 = vmatpush.msra.mxu0 %v1291
      %1333 = vmatmul.f32.gmra.mxu0 %v1294
      %v1334 = vpop.f32.mrf.mxu0
      %v1335 = vadd.f32 %v1267, %v1334
      %1336 = vmatmul.f32.gmra.mxu0 %v1297
      %v1337 = vpop.f32.mrf.mxu0
      %v1338 = vadd.f32 %v1270, %v1337
      %1339 = vmatmul.f32.gmra.mxu0 %v1300
      %v1340 = vpop.f32.mrf.mxu0
      %v1341 = vadd.f32 %v1273, %v1340
      %1342 = vmatmul.f32.gmra.mxu0 %v1303
      %v1343 = vpop.f32.mrf.mxu0
      %v1344 = vadd.f32 %v1276, %v1343
      %1345 = vmatmul.f32.gmra.mxu0 %v1306
      %v1346 = vpop.f32.mrf.mxu0
      %v1347 = vadd.f32 %v1279, %v1346
      %1348 = vmatmul.f32.gmra.mxu0 %v1309
      %v1349 = vpop.f32.mrf.mxu0
      %v1350 = vadd.f32 %v1282, %v1349
      %1351 = vmatmul.f32.gmra.mxu0 %v1312
      %v1352 = vpop.f32.mrf.mxu0
      %v1353 = vadd.f32 %v1285, %v1352
      %1354 = vmatmul.f32.gmra.mxu0 %v1315
      %v1355 = vpop.f32.mrf.mxu0
      %v1356 = vadd.f32 %v1288, %v1355
      %1357 = vdwg.mxu0
      %v1358 = vmul.f32 %v1335, %v1217
      %v1359 = vmul.f32 %v1338, %v1218
      %v1360 = vmul.f32 %v1341, %v1219
      %v1361 = vmul.f32 %v1344, %v1220
      %v1362 = vmul.f32 %v1347, %v1221
      %v1363 = vmul.f32 %v1350, %v1222
      %v1364 = vmul.f32 %v1353, %v1223
      %v1365 = vmul.f32 %v1356, %v1224
      %1366 = vrot.lane.b32.xlu0 %v900, 96
      %v1367 = vpop.permute.xlu0 %1366
      %1368 = vrot.lane.b32.xlu0 %v901, 96
      %v1369 = vpop.permute.xlu0 %1368
      %1370 = vrot.lane.b32.xlu0 %v902, 96
      %v1371 = vpop.permute.xlu0 %1370
      %1372 = vrot.lane.b32.xlu0 %v903, 96
      %v1373 = vpop.permute.xlu0 %1372
      %1374 = vrot.lane.b32.xlu0 %v904, 96
      %v1375 = vpop.permute.xlu0 %1374
      %1376 = vrot.lane.b32.xlu0 %v905, 96
      %v1377 = vpop.permute.xlu0 %1376
      %1378 = vrot.lane.b32.xlu0 %v906, 96
      %v1379 = vpop.permute.xlu0 %1378
      %1380 = vrot.lane.b32.xlu0 %v907, 96
      %v1381 = vpop.permute.xlu0 %1380
      %1382 = vrot.lane.b32.xlu0 %v890, 64
      %v1383 = vpop.permute.xlu0 %1382
      %v1384 = vsel %vm868, %v1367, 0
      %v1386 = vsel %vm868, %v1369, 0
      %v1388 = vsel %vm868, %v1371, 0
      %v1390 = vsel %vm868, %v1373, 0
      %v1392 = vsel %vm868, %v1375, 0
      %v1394 = vsel %vm868, %v1377, 0
      %v1396 = vsel %vm868, %v1379, 0
      %v1398 = vsel %vm868, %v1381, 0
      %v1400 = vsel %vm868, %v1383, 0
      %1402 = vmatpush.xpose.msra.mxu0 0.0
      %1403 = vmatpush.xpose.msra.mxu0 0.0
      %1404 = vmatpush.xpose.msra.mxu0 0.0
      %1405 = vmatpush.xpose.msra.mxu0 0.0
      %1406 = vmatpush.xpose.msra.mxu0 0.0
      %1407 = vmatpush.xpose.msra.mxu0 0.0
      %1408 = vmatpush.xpose.msra.mxu0 0.0
      %1409 = vmatpush.xpose.msra.mxu0 0.0
      %1410 = vmatpush.xpose.msra.mxu0 0.0
      %1411 = vmatpush.xpose.msra.mxu0 0.0
      %1412 = vmatpush.xpose.msra.mxu0 0.0
      %1413 = vmatpush.xpose.msra.mxu0 0.0
      %1414 = vmatpush.xpose.msra.mxu0 0.0
      %1415 = vmatpush.xpose.msra.mxu0 0.0
      %1416 = vmatpush.xpose.msra.mxu0 0.0
      %1417 = vmatpush.xpose.msra.mxu0 %v1400
      %1418 = vmatmul.f32.gmra.mxu0 %v1384
      %v1419 = vpop.f32.mrf.mxu0
      %v1420 = vadd.f32 0.0, %v1419
      %1421 = vmatmul.f32.gmra.mxu0 %v1386
      %v1422 = vpop.f32.mrf.mxu0
      %v1423 = vadd.f32 0.0, %v1422
      %1424 = vmatmul.f32.gmra.mxu0 %v1388
      %v1425 = vpop.f32.mrf.mxu0
      %v1426 = vadd.f32 0.0, %v1425
      %1427 = vmatmul.f32.gmra.mxu0 %v1390
      %v1428 = vpop.f32.mrf.mxu0
      %v1429 = vadd.f32 0.0, %v1428
      %1430 = vmatmul.f32.gmra.mxu0 %v1392
      %v1431 = vpop.f32.mrf.mxu0
      %v1432 = vadd.f32 0.0, %v1431
      %1433 = vmatmul.f32.gmra.mxu0 %v1394
      %v1434 = vpop.f32.mrf.mxu0
      %v1435 = vadd.f32 0.0, %v1434
      %1436 = vmatmul.f32.gmra.mxu0 %v1396
      %v1437 = vpop.f32.mrf.mxu0
      %v1438 = vadd.f32 0.0, %v1437
      %1439 = vmatmul.f32.gmra.mxu0 %v1398
      %v1440 = vpop.f32.mrf.mxu0
      %v1441 = vadd.f32 0.0, %v1440
      %1442 = vdwg.mxu0
      %1443 = vrot.lane.b32.xlu0 %v796, 32
      %v1444 = vpop.permute.xlu0 %1443
      %1445 = vrot.lane.b32.xlu0 %v799, 32
      %v1446 = vpop.permute.xlu0 %1445
      %1447 = vrot.lane.b32.xlu0 %v802, 32
      %v1448 = vpop.permute.xlu0 %1447
      %1449 = vrot.lane.b32.xlu0 %v805, 32
      %v1450 = vpop.permute.xlu0 %1449
      %1451 = vrot.lane.b32.xlu0 %v808, 32
      %v1452 = vpop.permute.xlu0 %1451
      %1453 = vrot.lane.b32.xlu0 %v811, 32
      %v1454 = vpop.permute.xlu0 %1453
      %1455 = vrot.lane.b32.xlu0 %v814, 32
      %v1456 = vpop.permute.xlu0 %1455
      %1457 = vrot.lane.b32.xlu0 %v817, 32
      %v1458 = vpop.permute.xlu0 %1457
      %v1459 = vsel %vm868, %v1444, 0
      %v1461 = vsel %vm868, %v1446, 0
      %v1463 = vsel %vm868, %v1448, 0
      %v1465 = vsel %vm868, %v1450, 0
      %v1467 = vsel %vm868, %v1452, 0
      %v1469 = vsel %vm868, %v1454, 0
      %v1471 = vsel %vm868, %v1456, 0
      %v1473 = vsel %vm868, %v1458, 0
      %1475 = vmatpush.xpose.msra.mxu0 0.0
      %1476 = vmatpush.xpose.msra.mxu0 0.0
      %1477 = vmatpush.xpose.msra.mxu0 0.0
      %1478 = vmatpush.xpose.msra.mxu0 0.0
      %1479 = vmatpush.xpose.msra.mxu0 0.0
      %1480 = vmatpush.xpose.msra.mxu0 0.0
      %1481 = vmatpush.xpose.msra.mxu0 0.0
      %1482 = vmatpush.xpose.msra.mxu0 0.0
      %1483 = vmatpush.xpose.msra.mxu0 %v1473
      %1484 = vmatpush.xpose.msra.mxu0 %v1471
      %1485 = vmatpush.xpose.msra.mxu0 %v1469
      %1486 = vmatpush.xpose.msra.mxu0 %v1467
      %1487 = vmatpush.xpose.msra.mxu0 %v1465
      %1488 = vmatpush.xpose.msra.mxu0 %v1463
      %1489 = vmatpush.xpose.msra.mxu0 %v1461
      %1490 = vmatpush.xpose.msra.mxu0 %v1459
      %1491 = vmatmul.f32.gmra.mxu0 %v1384
      %v1492 = vpop.f32.mrf.mxu0
      %v1493 = vadd.f32 0.0, %v1492
      %1494 = vmatmul.f32.gmra.mxu0 %v1386
      %v1495 = vpop.f32.mrf.mxu0
      %v1496 = vadd.f32 0.0, %v1495
      %1497 = vmatmul.f32.gmra.mxu0 %v1388
      %v1498 = vpop.f32.mrf.mxu0
      %v1499 = vadd.f32 0.0, %v1498
      %1500 = vmatmul.f32.gmra.mxu0 %v1390
      %v1501 = vpop.f32.mrf.mxu0
      %v1502 = vadd.f32 0.0, %v1501
      %1503 = vmatmul.f32.gmra.mxu0 %v1392
      %v1504 = vpop.f32.mrf.mxu0
      %v1505 = vadd.f32 0.0, %v1504
      %1506 = vmatmul.f32.gmra.mxu0 %v1394
      %v1507 = vpop.f32.mrf.mxu0
      %v1508 = vadd.f32 0.0, %v1507
      %1509 = vmatmul.f32.gmra.mxu0 %v1396
      %v1510 = vpop.f32.mrf.mxu0
      %v1511 = vadd.f32 0.0, %v1510
      %1512 = vmatmul.f32.gmra.mxu0 %v1398
      %v1513 = vpop.f32.mrf.mxu0
      %v1514 = vadd.f32 0.0, %v1513
      %1515 = vdwg.mxu0
      %v1516 = vsel %vm652, %v1420, -inf
      %1517 = vmax.xlane.f32.xlu0 %v1516
      %v1518 = vpop.xlane.xlu0 %1517
      %v1519 = vsel %vm652, %v1423, -inf
      %1520 = vmax.xlane.f32.xlu0 %v1519
      %v1521 = vpop.xlane.xlu0 %1520
      %v1522 = vsel %vm652, %v1426, -inf
      %1523 = vmax.xlane.f32.xlu0 %v1522
      %v1524 = vpop.xlane.xlu0 %1523
      %v1525 = vsel %vm652, %v1429, -inf
      %1526 = vmax.xlane.f32.xlu0 %v1525
      %v1527 = vpop.xlane.xlu0 %1526
      %v1528 = vsel %vm652, %v1432, -inf
      %1529 = vmax.xlane.f32.xlu0 %v1528
      %v1530 = vpop.xlane.xlu0 %1529
      %v1531 = vsel %vm652, %v1435, -inf
      %1532 = vmax.xlane.f32.xlu0 %v1531
      %v1533 = vpop.xlane.xlu0 %1532
      %v1534 = vsel %vm652, %v1438, -inf
      %1535 = vmax.xlane.f32.xlu0 %v1534
      %v1536 = vpop.xlane.xlu0 %1535
      %v1537 = vsel %vm652, %v1441, -inf
      %1538 = vmax.xlane.f32.xlu0 %v1537
      %v1539 = vpop.xlane.xlu0 %1538
      %v1540 = vsel %vm486, %v1493, -inf
      %1541 = vmax.xlane.f32.xlu0 %v1540
      %v1542 = vpop.xlane.xlu0 %1541
      %v1543 = vsel %vm486, %v1496, -inf
      %1544 = vmax.xlane.f32.xlu0 %v1543
      %v1545 = vpop.xlane.xlu0 %1544
      %v1546 = vsel %vm486, %v1499, -inf
      %1547 = vmax.xlane.f32.xlu0 %v1546
      %v1548 = vpop.xlane.xlu0 %1547
      %v1549 = vsel %vm486, %v1502, -inf
      %1550 = vmax.xlane.f32.xlu0 %v1549
      %v1551 = vpop.xlane.xlu0 %1550
      %v1552 = vsel %vm486, %v1505, -inf
      %1553 = vmax.xlane.f32.xlu0 %v1552
      %v1554 = vpop.xlane.xlu0 %1553
      %v1555 = vsel %vm486, %v1508, -inf
      %1556 = vmax.xlane.f32.xlu0 %v1555
      %v1557 = vpop.xlane.xlu0 %1556
      %v1558 = vsel %vm486, %v1511, -inf
      %1559 = vmax.xlane.f32.xlu0 %v1558
      %v1560 = vpop.xlane.xlu0 %1559
      %v1561 = vsel %vm486, %v1514, -inf
      %1562 = vmax.xlane.f32.xlu0 %v1561
      %v1563 = vpop.xlane.xlu0 %1562
      %v1564 = vmax.f32 %v1518, %v1542
      %v1565 = vmax.f32 %v1521, %v1545
      %v1566 = vmax.f32 %v1524, %v1548
      %v1567 = vmax.f32 %v1527, %v1551
      %v1568 = vmax.f32 %v1530, %v1554
      %v1569 = vmax.f32 %v1533, %v1557
      %v1570 = vmax.f32 %v1536, %v1560
      %v1571 = vmax.f32 %v1539, %v1563
      %v1572 = vsub.f32 %v1420, %v1564
      %v1573 = vsub.f32 %v1423, %v1565
      %v1574 = vsub.f32 %v1426, %v1566
      %v1575 = vsub.f32 %v1429, %v1567
      %v1576 = vsub.f32 %v1432, %v1568
      %v1577 = vsub.f32 %v1435, %v1569
      %v1578 = vsub.f32 %v1438, %v1570
      %v1579 = vsub.f32 %v1441, %v1571
      %v1580 = vmul.f32 %v1572, 1.442695
      %v1581 = vpow.pop %v1580
      %v1582 = vmul.f32 %v1573, 1.442695
      %v1583 = vpow.pop %v1582
      %v1584 = vmul.f32 %v1574, 1.442695
      %v1585 = vpow.pop %v1584
      %v1586 = vmul.f32 %v1575, 1.442695
      %v1587 = vpow.pop %v1586
      %v1588 = vmul.f32 %v1576, 1.442695
      %v1589 = vpow.pop %v1588
      %v1590 = vmul.f32 %v1577, 1.442695
      %v1591 = vpow.pop %v1590
      %v1592 = vmul.f32 %v1578, 1.442695
      %v1593 = vpow.pop %v1592
      %v1594 = vmul.f32 %v1579, 1.442695
      %v1595 = vpow.pop %v1594
      %v1596 = vsub.f32 %v1493, %v1564
      %v1597 = vsub.f32 %v1496, %v1565
      %v1598 = vsub.f32 %v1499, %v1566
      %v1599 = vsub.f32 %v1502, %v1567
      %v1600 = vsub.f32 %v1505, %v1568
      %v1601 = vsub.f32 %v1508, %v1569
      %v1602 = vsub.f32 %v1511, %v1570
      %v1603 = vsub.f32 %v1514, %v1571
      %v1604 = vmul.f32 %v1596, 1.442695
      %v1605 = vpow.pop %v1604
      %v1606 = vmul.f32 %v1597, 1.442695
      %v1607 = vpow.pop %v1606
      %v1608 = vmul.f32 %v1598, 1.442695
      %v1609 = vpow.pop %v1608
      %v1610 = vmul.f32 %v1599, 1.442695
      %v1611 = vpow.pop %v1610
      %v1612 = vmul.f32 %v1600, 1.442695
      %v1613 = vpow.pop %v1612
      %v1614 = vmul.f32 %v1601, 1.442695
      %v1615 = vpow.pop %v1614
      %v1616 = vmul.f32 %v1602, 1.442695
      %v1617 = vpow.pop %v1616
      %v1618 = vmul.f32 %v1603, 1.442695
      %v1619 = vpow.pop %v1618
      %v1620 = vsel %vm652, %v1581, 0.0
      %1621 = vadd.xlane.f32.xlu0 %v1620
      %v1622 = vpop.xlane.xlu0 %1621
      %v1623 = vsel %vm652, %v1583, 0.0
      %1624 = vadd.xlane.f32.xlu0 %v1623
      %v1625 = vpop.xlane.xlu0 %1624
      %v1626 = vsel %vm652, %v1585, 0.0
      %1627 = vadd.xlane.f32.xlu0 %v1626
      %v1628 = vpop.xlane.xlu0 %1627
      %v1629 = vsel %vm652, %v1587, 0.0
      %1630 = vadd.xlane.f32.xlu0 %v1629
      %v1631 = vpop.xlane.xlu0 %1630
      %v1632 = vsel %vm652, %v1589, 0.0
      %1633 = vadd.xlane.f32.xlu0 %v1632
      %v1634 = vpop.xlane.xlu0 %1633
      %v1635 = vsel %vm652, %v1591, 0.0
      %1636 = vadd.xlane.f32.xlu0 %v1635
      %v1637 = vpop.xlane.xlu0 %1636
      %v1638 = vsel %vm652, %v1593, 0.0
      %1639 = vadd.xlane.f32.xlu0 %v1638
      %v1640 = vpop.xlane.xlu0 %1639
      %v1641 = vsel %vm652, %v1595, 0.0
      %1642 = vadd.xlane.f32.xlu0 %v1641
      %v1643 = vpop.xlane.xlu0 %1642
      %v1644 = vsel %vm486, %v1605, 0.0
      %1645 = vadd.xlane.f32.xlu0 %v1644
      %v1646 = vpop.xlane.xlu0 %1645
      %v1647 = vsel %vm486, %v1607, 0.0
      %1648 = vadd.xlane.f32.xlu0 %v1647
      %v1649 = vpop.xlane.xlu0 %1648
      %v1650 = vsel %vm486, %v1609, 0.0
      %1651 = vadd.xlane.f32.xlu0 %v1650
      %v1652 = vpop.xlane.xlu0 %1651
      %v1653 = vsel %vm486, %v1611, 0.0
      %1654 = vadd.xlane.f32.xlu0 %v1653
      %v1655 = vpop.xlane.xlu0 %1654
      %v1656 = vsel %vm486, %v1613, 0.0
      %1657 = vadd.xlane.f32.xlu0 %v1656
      %v1658 = vpop.xlane.xlu0 %1657
      %v1659 = vsel %vm486, %v1615, 0.0
      %1660 = vadd.xlane.f32.xlu0 %v1659
      %v1661 = vpop.xlane.xlu0 %1660
      %v1662 = vsel %vm486, %v1617, 0.0
      %1663 = vadd.xlane.f32.xlu0 %v1662
      %v1664 = vpop.xlane.xlu0 %1663
      %v1665 = vsel %vm486, %v1619, 0.0
      %1666 = vadd.xlane.f32.xlu0 %v1665
      %v1667 = vpop.xlane.xlu0 %1666
      %v1668 = vadd.f32 %v1622, %v1646
      %v1669 = vadd.f32 %v1625, %v1649
      %v1670 = vadd.f32 %v1628, %v1652
      %v1671 = vadd.f32 %v1631, %v1655
      %v1672 = vadd.f32 %v1634, %v1658
      %v1673 = vadd.f32 %v1637, %v1661
      %v1674 = vadd.f32 %v1640, %v1664
      %v1675 = vadd.f32 %v1643, %v1667
      %v1676 = vrcp.pop %v1668
      %v1677 = vrcp.pop %v1669
      %v1678 = vrcp.pop %v1670
      %v1679 = vrcp.pop %v1671
      %v1680 = vrcp.pop %v1672
      %v1681 = vrcp.pop %v1673
      %v1682 = vrcp.pop %v1674
      %v1683 = vrcp.pop %v1675
      %1692 = vrot.lane.b32.xlu0 %v837, 96
      %v1693 = vpop.permute.xlu0 %1692
      %1694 = vrot.lane.b32.xlu0 %v840, 96
      %v1695 = vpop.permute.xlu0 %1694
      %1696 = vrot.lane.b32.xlu0 %v843, 96
      %v1697 = vpop.permute.xlu0 %1696
      %1698 = vrot.lane.b32.xlu0 %v846, 96
      %v1699 = vpop.permute.xlu0 %1698
      %1700 = vrot.lane.b32.xlu0 %v849, 96
      %v1701 = vpop.permute.xlu0 %1700
      %1702 = vrot.lane.b32.xlu0 %v852, 96
      %v1703 = vpop.permute.xlu0 %1702
      %1704 = vrot.lane.b32.xlu0 %v855, 96
      %v1705 = vpop.permute.xlu0 %1704
      %1706 = vrot.lane.b32.xlu0 %v858, 96
      %v1707 = vpop.permute.xlu0 %1706
      %v1717 = vsel %vm486, %v1605, 0
      %v1720 = vsel %vm486, %v1607, 0
      %v1723 = vsel %vm486, %v1609, 0
      %v1726 = vsel %vm486, %v1611, 0
      %v1729 = vsel %vm486, %v1613, 0
      %v1732 = vsel %vm486, %v1615, 0
      %v1735 = vsel %vm486, %v1617, 0
      %v1738 = vsel %vm486, %v1619, 0
      %1740 = vmatpush.msra.mxu0 0.0
      %1741 = vmatpush.msra.mxu0 0.0
      %1742 = vmatpush.msra.mxu0 0.0
      %1743 = vmatpush.msra.mxu0 0.0
      %1744 = vmatpush.msra.mxu0 0.0
      %1745 = vmatpush.msra.mxu0 0.0
      %1746 = vmatpush.msra.mxu0 0.0
      %1747 = vmatpush.msra.mxu0 0.0
      %1748 = vmatpush.msra.mxu0 %v1707
      %1749 = vmatpush.msra.mxu0 %v1705
      %1750 = vmatpush.msra.mxu0 %v1703
      %1751 = vmatpush.msra.mxu0 %v1701
      %1752 = vmatpush.msra.mxu0 %v1699
      %1753 = vmatpush.msra.mxu0 %v1697
      %1754 = vmatpush.msra.mxu0 %v1695
      %1755 = vmatpush.msra.mxu0 %v1693
      %1756 = vmatmul.f32.gmra.mxu0 %v1717
      %v1757 = vpop.f32.mrf.mxu0
      %v1758 = vadd.f32 0.0, %v1757
      %1759 = vmatmul.f32.gmra.mxu0 %v1720
      %v1760 = vpop.f32.mrf.mxu0
      %v1761 = vadd.f32 0.0, %v1760
      %1762 = vmatmul.f32.gmra.mxu0 %v1723
      %v1763 = vpop.f32.mrf.mxu0
      %v1764 = vadd.f32 0.0, %v1763
      %1765 = vmatmul.f32.gmra.mxu0 %v1726
      %v1766 = vpop.f32.mrf.mxu0
      %v1767 = vadd.f32 0.0, %v1766
      %1768 = vmatmul.f32.gmra.mxu0 %v1729
      %v1769 = vpop.f32.mrf.mxu0
      %v1770 = vadd.f32 0.0, %v1769
      %1771 = vmatmul.f32.gmra.mxu0 %v1732
      %v1772 = vpop.f32.mrf.mxu0
      %v1773 = vadd.f32 0.0, %v1772
      %1774 = vmatmul.f32.gmra.mxu0 %v1735
      %v1775 = vpop.f32.mrf.mxu0
      %v1776 = vadd.f32 0.0, %v1775
      %1777 = vmatmul.f32.gmra.mxu0 %v1738
      %v1778 = vpop.f32.mrf.mxu0
      %v1779 = vadd.f32 0.0, %v1778
      %1780 = vdwg.mxu0
      %1781 = vrot.lane.b32.xlu0 %v890, 32
      %v1782 = vpop.permute.xlu0 %1781
      %v1785 = vsel %vm652, %v1581, 0
      %v1788 = vsel %vm652, %v1583, 0
      %v1791 = vsel %vm652, %v1585, 0
      %v1794 = vsel %vm652, %v1587, 0
      %v1797 = vsel %vm652, %v1589, 0
      %v1800 = vsel %vm652, %v1591, 0
      %v1803 = vsel %vm652, %v1593, 0
      %v1806 = vsel %vm652, %v1595, 0
      %1808 = vmatpush.msra.mxu0 0.0
      %1809 = vmatpush.msra.mxu0 0.0
      %1810 = vmatpush.msra.mxu0 0.0
      %1811 = vmatpush.msra.mxu0 0.0
      %1812 = vmatpush.msra.mxu0 0.0
      %1813 = vmatpush.msra.mxu0 0.0
      %1814 = vmatpush.msra.mxu0 0.0
      %1815 = vmatpush.msra.mxu0 0.0
      %1816 = vmatpush.msra.mxu0 0.0
      %1817 = vmatpush.msra.mxu0 0.0
      %1818 = vmatpush.msra.mxu0 0.0
      %1819 = vmatpush.msra.mxu0 0.0
      %1820 = vmatpush.msra.mxu0 0.0
      %1821 = vmatpush.msra.mxu0 0.0
      %1822 = vmatpush.msra.mxu0 0.0
      %1823 = vmatpush.msra.mxu0 %v1782
      %1824 = vmatmul.f32.gmra.mxu0 %v1785
      %v1825 = vpop.f32.mrf.mxu0
      %v1826 = vadd.f32 %v1758, %v1825
      %1827 = vmatmul.f32.gmra.mxu0 %v1788
      %v1828 = vpop.f32.mrf.mxu0
      %v1829 = vadd.f32 %v1761, %v1828
      %1830 = vmatmul.f32.gmra.mxu0 %v1791
      %v1831 = vpop.f32.mrf.mxu0
      %v1832 = vadd.f32 %v1764, %v1831
      %1833 = vmatmul.f32.gmra.mxu0 %v1794
      %v1834 = vpop.f32.mrf.mxu0
      %v1835 = vadd.f32 %v1767, %v1834
      %1836 = vmatmul.f32.gmra.mxu0 %v1797
      %v1837 = vpop.f32.mrf.mxu0
      %v1838 = vadd.f32 %v1770, %v1837
      %1839 = vmatmul.f32.gmra.mxu0 %v1800
      %v1840 = vpop.f32.mrf.mxu0
      %v1841 = vadd.f32 %v1773, %v1840
      %1842 = vmatmul.f32.gmra.mxu0 %v1803
      %v1843 = vpop.f32.mrf.mxu0
      %v1844 = vadd.f32 %v1776, %v1843
      %1845 = vmatmul.f32.gmra.mxu0 %v1806
      %v1846 = vpop.f32.mrf.mxu0
      %v1847 = vadd.f32 %v1779, %v1846
      %1848 = vdwg.mxu0
      %v1849 = vmul.f32 %v1826, %v1676
      %v1850 = vmul.f32 %v1829, %v1677
      %v1851 = vmul.f32 %v1832, %v1678
      %v1852 = vmul.f32 %v1835, %v1679
      %v1853 = vmul.f32 %v1838, %v1680
      %v1854 = vmul.f32 %v1841, %v1681
      %v1855 = vmul.f32 %v1844, %v1682
      %v1856 = vmul.f32 %v1847, %v1683
      %1865 = vrot.lane.b32.xlu0 %v892, 96
      %v1866 = vpop.permute.xlu0 %1865
      %1867 = vrot.lane.b32.xlu0 %v893, 96
      %v1868 = vpop.permute.xlu0 %1867
      %1869 = vrot.lane.b32.xlu0 %v894, 96
      %v1870 = vpop.permute.xlu0 %1869
      %1871 = vrot.lane.b32.xlu0 %v895, 96
      %v1872 = vpop.permute.xlu0 %1871
      %1873 = vrot.lane.b32.xlu0 %v896, 96
      %v1874 = vpop.permute.xlu0 %1873
      %1875 = vrot.lane.b32.xlu0 %v897, 96
      %v1876 = vpop.permute.xlu0 %1875
      %1877 = vrot.lane.b32.xlu0 %v898, 96
      %v1878 = vpop.permute.xlu0 %1877
      %1879 = vrot.lane.b32.xlu0 %v899, 96
      %v1880 = vpop.permute.xlu0 %1879
      %v1881 = vsel %vm868, %v1866, 0
      %v1883 = vsel %vm868, %v1868, 0
      %v1885 = vsel %vm868, %v1870, 0
      %v1887 = vsel %vm868, %v1872, 0
      %v1889 = vsel %vm868, %v1874, 0
      %v1891 = vsel %vm868, %v1876, 0
      %v1893 = vsel %vm868, %v1878, 0
      %v1895 = vsel %vm868, %v1880, 0
      %v1898 = vsel %vm868, %v1849, 0
      %v1901 = vsel %vm868, %v1850, 0
      %v1904 = vsel %vm868, %v1851, 0
      %v1907 = vsel %vm868, %v1852, 0
      %v1910 = vsel %vm868, %v1853, 0
      %v1913 = vsel %vm868, %v1854, 0
      %v1916 = vsel %vm868, %v1855, 0
      %v1919 = vsel %vm868, %v1856, 0
      %1921 = vmatpush.xpose.msra.mxu0 0.0
      %1922 = vmatpush.xpose.msra.mxu0 0.0
      %1923 = vmatpush.xpose.msra.mxu0 0.0
      %1924 = vmatpush.xpose.msra.mxu0 0.0
      %1925 = vmatpush.xpose.msra.mxu0 0.0
      %1926 = vmatpush.xpose.msra.mxu0 0.0
      %1927 = vmatpush.xpose.msra.mxu0 0.0
      %1928 = vmatpush.xpose.msra.mxu0 0.0
      %1929 = vmatpush.xpose.msra.mxu0 %v1919
      %1930 = vmatpush.xpose.msra.mxu0 %v1916
      %1931 = vmatpush.xpose.msra.mxu0 %v1913
      %1932 = vmatpush.xpose.msra.mxu0 %v1910
      %1933 = vmatpush.xpose.msra.mxu0 %v1907
      %1934 = vmatpush.xpose.msra.mxu0 %v1904
      %1935 = vmatpush.xpose.msra.mxu0 %v1901
      %1936 = vmatpush.xpose.msra.mxu0 %v1898
      %1937 = vmatmul.f32.gmra.mxu0 %v1881
      %v1938 = vpop.f32.mrf.mxu0
      %v1939 = vadd.f32 0.0, %v1938
      %1940 = vmatmul.f32.gmra.mxu0 %v1883
      %v1941 = vpop.f32.mrf.mxu0
      %v1942 = vadd.f32 0.0, %v1941
      %1943 = vmatmul.f32.gmra.mxu0 %v1885
      %v1944 = vpop.f32.mrf.mxu0
      %v1945 = vadd.f32 0.0, %v1944
      %1946 = vmatmul.f32.gmra.mxu0 %v1887
      %v1947 = vpop.f32.mrf.mxu0
      %v1948 = vadd.f32 0.0, %v1947
      %1949 = vmatmul.f32.gmra.mxu0 %v1889
      %v1950 = vpop.f32.mrf.mxu0
      %v1951 = vadd.f32 0.0, %v1950
      %1952 = vmatmul.f32.gmra.mxu0 %v1891
      %v1953 = vpop.f32.mrf.mxu0
      %v1954 = vadd.f32 0.0, %v1953
      %1955 = vmatmul.f32.gmra.mxu0 %v1893
      %v1956 = vpop.f32.mrf.mxu0
      %v1957 = vadd.f32 0.0, %v1956
      %1958 = vmatmul.f32.gmra.mxu0 %v1895
      %v1959 = vpop.f32.mrf.mxu0
      %v1960 = vadd.f32 0.0, %v1959
      %1961 = vdwg.mxu0
      %v1962 = vsel %vm868, %v892, 0
      %v1964 = vsel %vm868, %v893, 0
      %v1966 = vsel %vm868, %v894, 0
      %v1968 = vsel %vm868, %v895, 0
      %v1970 = vsel %vm868, %v896, 0
      %v1972 = vsel %vm868, %v897, 0
      %v1974 = vsel %vm868, %v898, 0
      %v1976 = vsel %vm868, %v899, 0
      %v1979 = vsel %vm868, %v1358, 0
      %v1982 = vsel %vm868, %v1359, 0
      %v1985 = vsel %vm868, %v1360, 0
      %v1988 = vsel %vm868, %v1361, 0
      %v1991 = vsel %vm868, %v1362, 0
      %v1994 = vsel %vm868, %v1363, 0
      %v1997 = vsel %vm868, %v1364, 0
      %v2000 = vsel %vm868, %v1365, 0
      %2002 = vmatpush.xpose.msra.mxu0 0.0
      %2003 = vmatpush.xpose.msra.mxu0 0.0
      %2004 = vmatpush.xpose.msra.mxu0 0.0
      %2005 = vmatpush.xpose.msra.mxu0 0.0
      %2006 = vmatpush.xpose.msra.mxu0 0.0
      %2007 = vmatpush.xpose.msra.mxu0 0.0
      %2008 = vmatpush.xpose.msra.mxu0 0.0
      %2009 = vmatpush.xpose.msra.mxu0 0.0
      %2010 = vmatpush.xpose.msra.mxu0 %v2000
      %2011 = vmatpush.xpose.msra.mxu0 %v1997
      %2012 = vmatpush.xpose.msra.mxu0 %v1994
      %2013 = vmatpush.xpose.msra.mxu0 %v1991
      %2014 = vmatpush.xpose.msra.mxu0 %v1988
      %2015 = vmatpush.xpose.msra.mxu0 %v1985
      %2016 = vmatpush.xpose.msra.mxu0 %v1982
      %2017 = vmatpush.xpose.msra.mxu0 %v1979
      %2018 = vmatmul.f32.gmra.mxu0 %v1962
      %v2019 = vpop.f32.mrf.mxu0
      %v2020 = vadd.f32 %v1939, %v2019
      %2021 = vmatmul.f32.gmra.mxu0 %v1964
      %v2022 = vpop.f32.mrf.mxu0
      %v2023 = vadd.f32 %v1942, %v2022
      %2024 = vmatmul.f32.gmra.mxu0 %v1966
      %v2025 = vpop.f32.mrf.mxu0
      %v2026 = vadd.f32 %v1945, %v2025
      %2027 = vmatmul.f32.gmra.mxu0 %v1968
      %v2028 = vpop.f32.mrf.mxu0
      %v2029 = vadd.f32 %v1948, %v2028
      %2030 = vmatmul.f32.gmra.mxu0 %v1970
      %v2031 = vpop.f32.mrf.mxu0
      %v2032 = vadd.f32 %v1951, %v2031
      %2033 = vmatmul.f32.gmra.mxu0 %v1972
      %v2034 = vpop.f32.mrf.mxu0
      %v2035 = vadd.f32 %v1954, %v2034
      %2036 = vmatmul.f32.gmra.mxu0 %v1974
      %v2037 = vpop.f32.mrf.mxu0
      %v2038 = vadd.f32 %v1957, %v2037
      %2039 = vmatmul.f32.gmra.mxu0 %v1976
      %v2040 = vpop.f32.mrf.mxu0
      %v2041 = vadd.f32 %v1960, %v2040
      %2042 = vdwg.mxu0
      %v2043 = vadd.f32 %v458, %v2020
      %v2044 = vadd.f32 %v459, %v2023
      %v2045 = vadd.f32 %v460, %v2026
      %v2046 = vadd.f32 %v461, %v2029
      %v2047 = vadd.f32 %v462, %v2032
      %v2048 = vadd.f32 %v463, %v2035
      %v2049 = vadd.f32 %v464, %v2038
      %v2050 = vadd.f32 %v465, %v2041
      %v2051 = vld [vmem:[%s12] sm:$0xff]
      %v2052 = vld [vmem:[%s12 + $0x8] sm:$0xff]
      %v2053 = vld [vmem:[%s12 + $0x10] sm:$0xff]
      %v2054 = vld [vmem:[%s12 + $0x18] sm:$0xff]
      %v2055 = vld [vmem:[%s12 + $0x20] sm:$0xff]
      %v2056 = vld [vmem:[%s12 + $0x28] sm:$0xff]
      %v2057 = vld [vmem:[%s12 + $0x30] sm:$0xff]
      %v2058 = vld [vmem:[%s12 + $0x38] sm:$0xff]
      %2060 = vset.pattern.permute.xlu0 0
      %2061 = vperm.xlu0 %2060, %v2051
      %v2062 = vpop.permute.xlu0 %2061
      %2065 = vset.pattern.permute.xlu0 0
      %2066 = vperm.xlu0 %2065, %v2052
      %v2067 = vpop.permute.xlu0 %2066
      %2070 = vset.pattern.permute.xlu0 0
      %2071 = vperm.xlu0 %2070, %v2053
      %v2072 = vpop.permute.xlu0 %2071
      %2075 = vset.pattern.permute.xlu0 0
      %2076 = vperm.xlu0 %2075, %v2054
      %v2077 = vpop.permute.xlu0 %2076
      %2080 = vset.pattern.permute.xlu0 0
      %2081 = vperm.xlu0 %2080, %v2055
      %v2082 = vpop.permute.xlu0 %2081
      %2085 = vset.pattern.permute.xlu0 0
      %2086 = vperm.xlu0 %2085, %v2056
      %v2087 = vpop.permute.xlu0 %2086
      %2090 = vset.pattern.permute.xlu0 0
      %2091 = vperm.xlu0 %2090, %v2057
      %v2092 = vpop.permute.xlu0 %2091
      %2095 = vset.pattern.permute.xlu0 0
      %2096 = vperm.xlu0 %2095, %v2058
      %v2097 = vpop.permute.xlu0 %2096
      %v2099 = vadd.f32 %v2043, %v2062
      %v2100 = vadd.f32 %v2044, %v2067
      %v2101 = vadd.f32 %v2045, %v2072
      %v2102 = vadd.f32 %v2046, %v2077
      %v2103 = vadd.f32 %v2047, %v2082
      %v2104 = vadd.f32 %v2048, %v2087
      %v2105 = vadd.f32 %v2049, %v2092
      %v2106 = vadd.f32 %v2050, %v2097
      %2107 = vst.msk [vmem:[%s457] sm:$0xff] %vm486, %v2099
      %2108 = vst.msk [vmem:[%s457 + $0x8] sm:$0xff] %vm486, %v2100
      %2109 = vst.msk [vmem:[%s457 + $0x10] sm:$0xff] %vm486, %v2101
      %2110 = vst.msk [vmem:[%s457 + $0x18] sm:$0xff] %vm486, %v2102
      %2111 = vst.msk [vmem:[%s457 + $0x20] sm:$0xff] %vm486, %v2103
      %2112 = vst.msk [vmem:[%s457 + $0x28] sm:$0xff] %vm486, %v2104
      %2113 = vst.msk [vmem:[%s457 + $0x30] sm:$0xff] %vm486, %v2105
      %2114 = vst.msk [vmem:[%s457 + $0x38] sm:$0xff] %vm486, %v2106
      %p2115 = scmp.lt.s32.totalorder %s24, 1
      %s2116 = scalar_select %p2115, %s24, 1
      %s2117 = smul.addr %s2116, 8
      %s2118 = smul.addr %s2117, 8
      %s2119 = scalar_lea.vmem %s13, %s2118
      // Predicated region
      $region73: #{adm_attention_block.1} parent=71 // pred_check
        %p2120 = pneg %p325
      $region74: #{adm_attention_block.1} parent=71 // pred_check_branch
        %2122 = sbr.rel (%p2120) target = $region76
      $region75: #{adm_attention_block.1} parent=71 // pred_region
        _
      $region76: #{adm_attention_block.1} parent=71 // pred_fallthru
        _
    $region72: #{adm_attention_block.1} parent=5 // pred_fallthru
      _
    %p2123 = scmp.le.s32.totalorder 2, %s19
    // Predicated region
    $region77: #{adm_attention_block.1} parent=5 // pred_check
      %p2124 = pneg %p2123
    $region78: #{adm_attention_block.1} parent=5 // pred_check_branch
      %2126 = sbr.rel (%p2124) target = $region80
    $region79: #{adm_attention_block.1} parent=5 // pred_region
      %s2127 = ssub.s32 %s19, 2
      // Predicated region
      $region81: #{adm_attention_block.1} parent=79 // pred_check
        %p2128 = pneg %p331
      $region82: #{adm_attention_block.1} parent=79 // pred_check_branch
        %2130 = sbr.rel (%p2128) target = $region84
      $region83: #{adm_attention_block.1} parent=79 // pred_region
        %p2131 = scmp.lt.s32.totalorder %s25, 1
        %s2132 = scalar_select %p2131, %s25, 1
        %s2133 = smul.addr %s2132, 8
        %s2134 = smul.addr %s2133, 8
        %s2135 = scalar_lea.vmem %s13, %s2134
      $region84: #{adm_attention_block.1} parent=79 // pred_fallthru
        _
    $region80: #{adm_attention_block.1} parent=5 // pred_fallthru
      _
  $region6: #{adm_attention_block.1} parent=0 // loop_footer
    %s23 = sadd.s32 1, %s19
  $region7: #{adm_attention_block.1} parent=0 // loop_footer_branch
    %18 = sbr.rel target = $region3
  $region8: #{adm_attention_block.1} parent=0 // loop_exit
    _

</llo_original>
